<compile_context>
chip_gen: v6e
topology: v6e:2x2x1
jax: 0.10.0
libtpu: 0.0.40
codegen_flags: <defaults>
</compile_context>

<pallas_src>
import functools

import numpy as np
import jax
import jax.numpy as jnp
from jax.experimental import pallas as pl
from jax.experimental.pallas import tpu as pltpu


def _round_up(x, m):
    return ((x + m - 1) // m) * m


_ITEMSIZE = {jnp.bfloat16: 2, jnp.float32: 4, jnp.int32: 4}


def _nbytes(shape, dtype):
    n = 1
    for s in shape:
        n *= int(s)
    return n * _ITEMSIZE[dtype]


# -----------------------------------------------------------------------------
# Fused GRIT attention kernel (edge-tiled).
# -----------------------------------------------------------------------------
def _grit_attn_kernel(
    # --- edge-tiled inputs ---
    src_ref,        # [TE, 1]  int32  edge_index[0] tile (pad rows = N)
    dst_ref,        # [TE, 1]  int32  edge_index[1] tile (pad rows = N)
    dstT_ref,       # [1, TE]  int32  same dst tile, lane-major (for scatter)
    ea_ref,         # [TE, in] bf16   edge_attr tile
    # --- resident inputs ---
    nid_row_ref,    # [1, N]   int32  node ids (for one-hot build, no iota)
    nid_col_ref,    # [N, 1]   int32
    x_ref,          # [N, in]  bf16
    wq_ref,         # [in, HD]   bf16
    wkv_ref,        # [in, 2*HD] bf16   (columns: K | V)
    bq_ref,         # [1, HD]    f32
    bkv_ref,        # [1, 2*HD]  f32
    we_ref,         # [in, 2*HD] bf16   (columns permuted: E_w | E_b)
    be_ref,         # [1, 2*HD]  f32
    aw_ref,         # [HD, H]  f32   Aw as a block matrix
    hexp_ref,       # [H, HD]  f32   per-head lane expander (0/1)
    verow_ref,      # [HD, HD] f32   VeRow as a block-diagonal matrix
    # --- outputs ---
    h_out_ref,      # [N, HD]  f32   resident; written at the last tile
    e_out_ref,      # [TE, HD] f32   streamed per tile
    # --- VMEM scratch (persists across the edge grid) ---
    q_sc,           # [N, HD]    bf16 projected Q
    kv_sc,          # [N, 2*HD]  bf16 projected K | V (fused gather source)
    rhs_sc,         # [TE, 3*HD] bf16 staged scatter RHS
    acc,            # [N, 3*HD]  f32  fused accumulator [sum exp*V | sum exp*e_t | sum exp]
    *, num_heads, out_dim, clamp,
):
    f32, bf16 = jnp.float32, jnp.bfloat16
    H, D = num_heads, out_dim
    HD = H * D

    t = pl.program_id(0)

    # ---- tile 0: fold Q / (K|V) projections in + zero the accumulator ------
    @pl.when(t == 0)
    def _init():
        xb = x_ref[...]
        q_sc[...] = (jnp.dot(xb, wq_ref[...], preferred_element_type=f32)
                     + bq_ref[...]).astype(bf16)
        kv_sc[...] = (jnp.dot(xb, wkv_ref[...], preferred_element_type=f32)
                      + bkv_ref[...]).astype(bf16)
        acc[...] = jnp.zeros_like(acc)

    # ---- one-hot incidence matrices (built from resident node ids) ---------
    # Padded edges carry node id N (out of range) -> all-zero rows/cols, so
    # they contribute nothing to the node accumulator.
    nid_row = nid_row_ref[...]                                   # [1, N]
    adj_src = (src_ref[...] == nid_row).astype(bf16)             # [TE, N]
    adj_dst = (dst_ref[...] == nid_row).astype(bf16)             # [TE, N]
    adj_dst_t = (nid_col_ref[...] == dstT_ref[...]).astype(bf16)  # [N, TE]

    # ---- fused gathers (bf16 MXU, f32 accumulation) -------------------------
    kv_src = jnp.dot(adj_src, kv_sc[...], preferred_element_type=f32)  # [TE, 2HD]
    q_dst = jnp.dot(adj_dst, q_sc[...], preferred_element_type=f32)    # [TE, HD]

    # fused E projection; wrapper permuted columns so E_w=[:, :HD], E_b=[:, HD:]
    e_proj = (jnp.dot(ea_ref[...], we_ref[...], preferred_element_type=f32)
              + be_ref[...])                                           # [TE, 2HD]

    score = kv_src[:, :HD] + q_dst            # K_h[src] + Q_h[dst]
    score = score * e_proj[:, :HD]            # * E_w
    # signed sqrt: sqrt(relu(x)) - sqrt(relu(-x))
    score = (jnp.sqrt(jnp.maximum(score, 0.0))
             - jnp.sqrt(jnp.maximum(-score, 0.0)))
    score = score + e_proj[:, HD:]            # + E_b ; act = Identity -> e_t
    e_out_ref[...] = score                    # batch_wE, streamed out per tile

    # einsum('ehd,dhc->ehc', e_t, Aw)  ==  e_t_flat @ Aw_block   -> [TE, H]
    s = jnp.dot(score, aw_ref[...], preferred_element_type=f32)
    s = jnp.clip(s, -clamp, clamp)
    # |s| <= clamp, so exp is stable; pyg_softmax's per-group max subtraction
    # cancels in the normalization and is dropped (no [Em, N, H] intermediate).
    exp_s = jnp.exp(s)                                                 # [TE, H]
    # dropout(p=0.0) is the identity.

    # broadcast each head's weight over its D lanes: [TE, H] @ [H, HD]
    exp_rep = jnp.dot(exp_s, hexp_ref[...], preferred_element_type=f32)  # [TE, HD]

    # ---- single fused scatter-add to destination nodes ----------------------
    rhs_sc[:, :HD] = (kv_src[:, HD:] * exp_rep).astype(bf16)   # exp * V_h[src]
    rhs_sc[:, HD:2 * HD] = (score * exp_rep).astype(bf16)      # exp * e_t
    rhs_sc[:, 2 * HD:] = exp_rep.astype(bf16)                  # exp (denominator)
    acc[...] += jnp.dot(adj_dst_t, rhs_sc[...],
                        preferred_element_type=f32)            # [N, 3HD]

    # ---- last tile: normalize + edge enhancement, write node output --------
    @pl.when(t == pl.num_programs(0) - 1)
    def _finalize():
        a = acc[...]
        inv = 1.0 / (a[:, 2 * HD:] + 1e-16)        # same guard as pyg_softmax
        wv = a[:, :HD] * inv                       # batch_wV
        # einsum('nhd,dhc->nhc', rowV, VeRow) == rowV_flat @ blockdiag(VeRow)
        row_v = jnp.dot(a[:, HD:2 * HD] * inv, verow_ref[...],
                        preferred_element_type=f32)
        h_out_ref[...] = wv + row_v


# -----------------------------------------------------------------------------
# Wrapper: layout plumbing + VMEM budgeting + pallas_call
# -----------------------------------------------------------------------------
def grit_attention(x, edge_attr, edge_index, params, *, num_heads, out_dim,
                   clamp=5.0, edge_tile=512, vmem_cap_bytes=48 * 1024 * 1024):
    """Forward pass of MultiHeadAttentionLayerGritSparse.

    Returns (h_out [N, H, D], e_out [Em, H*D])."""
    f32, bf16 = jnp.float32, jnp.bfloat16
    N, in_dim = x.shape
    Em = edge_attr.shape[0]
    H, D = num_heads, out_dim
    HD = H * D

    # ---- edge-tile sizing + explicit VMEM budget ----------------------------
    def _vmem_estimate(te):
        n_pad = max(_round_up(N, 8), 8)
        # streamed inputs + streamed output (double-buffered by the pipeline)
        stream = (2 * _nbytes((te, 1), jnp.int32) + _nbytes((1, te), jnp.int32)
                  + _nbytes((te, in_dim), jnp.bfloat16)
                  + _nbytes((te, HD), jnp.float32))
        # resident inputs + resident output (also double-buffered by default)
        resident = (_nbytes((1, N), jnp.int32) + _nbytes((N, 1), jnp.int32)
                    + _nbytes((N, in_dim), jnp.bfloat16)
                    + _nbytes((in_dim, HD), jnp.bfloat16)
                    + 2 * _nbytes((in_dim, 2 * HD), jnp.bfloat16)
                    + _nbytes((1, HD), jnp.float32)
                    + 2 * _nbytes((1, 2 * HD), jnp.float32)
                    + _nbytes((HD, H), jnp.float32)
                    + _nbytes((H, HD), jnp.float32)
                    + _nbytes((HD, HD), jnp.float32)
                    + _nbytes((N, HD), jnp.float32))
        scratch = (_nbytes((N, HD), jnp.bfloat16)
                   + _nbytes((N, 2 * HD), jnp.bfloat16)
                   + _nbytes((te, 3 * HD), jnp.bfloat16)
                   + _nbytes((N, 3 * HD), jnp.float32))
        # per-tile one-hot / intermediate vector temporaries (generous)
        lanes_n = max(_round_up(N, 128), 128)
        lanes_w = max(_round_up(3 * HD, 128), 128)
        tmp = 3 * te * lanes_n * 2 + 6 * te * lanes_w * 4 + 2 * n_pad * lanes_w * 4
        return 2 * (stream + resident) + scratch + tmp

    edge_tile = max(_round_up(int(edge_tile), 128), 128)
    TE = min(edge_tile, _round_up(Em, 128))
    while TE > 128 and _vmem_estimate(TE) > vmem_cap_bytes:
        TE -= 128
    vmem_limit = int(min(max(2 * _vmem_estimate(TE), 32 * 1024 * 1024),
                         vmem_cap_bytes))

    Em_pad = _round_up(Em, TE)
    n_tiles = Em_pad // TE
    pad = Em_pad - Em

    src = edge_index[0].astype(jnp.int32)
    dst = edge_index[1].astype(jnp.int32)
    ea = edge_attr
    if pad:
        src = jnp.concatenate([src, jnp.full((pad,), N, jnp.int32)])
        dst = jnp.concatenate([dst, jnp.full((pad,), N, jnp.int32)])
        ea = jnp.concatenate([ea, jnp.zeros((pad, in_dim), ea.dtype)], axis=0)
    src_col = src.reshape(Em_pad, 1)
    dst_col = dst.reshape(Em_pad, 1)
    dst_row = dst.reshape(1, Em_pad)

    nid = jnp.arange(N, dtype=jnp.int32)
    nid_row = nid.reshape(1, N)
    nid_col = nid.reshape(N, 1)

    # ---- one-time layout plumbing (wrapper side, outside the hot loop) ------
    # Permute E's output columns so E_w occupies lanes [0,HD) and E_b [HD,2HD).
    perm = np.empty(2 * HD, dtype=np.int32)
    for h in range(H):
        for d in range(D):
            perm[h * D + d] = h * 2 * D + d            # E_w block
            perm[HD + h * D + d] = h * 2 * D + D + d   # E_b block
    we_p = params["We"][:, perm]
    be_p = params["be"][:, perm]

    # Fuse K and V projections into one weight/bias (single matmul, fused gather).
    wkv = jnp.concatenate([params["Wk"], params["Wv"]], axis=1)   # [in, 2HD]
    bkv = jnp.concatenate([params["bk"], params["bv"]], axis=1)   # [1, 2HD]

    eye_h = jnp.eye(H, dtype=f32)
    # Aw [D,H,1] -> block matrix [HD,H]: row h*D+d, col h holds Aw[d,h,0]
    aw_mat = (params["Aw"][:, :, 0].T[:, :, None] * eye_h[:, None, :]).reshape(HD, H)
    # head expander [H, HD]: ones on each head's D-lane block
    hexp = jnp.kron(eye_h, jnp.ones((1, D), f32))
    # VeRow [D,H,D] -> block-diagonal [HD,HD] (head-h block = VeRow[:, h, :])
    ver = jnp.transpose(params["VeRow"], (1, 0, 2))                  # [H, D, D]
    verow_bd = (ver[:, :, None, :] * eye_h[:, None, :, None]).reshape(HD, HD)

    def _resident(shape):
        return pl.BlockSpec(shape, lambda t: (0,) * len(shape))

    kernel = functools.partial(
        _grit_attn_kernel,
        num_heads=H, out_dim=D, clamp=float(abs(clamp)))

    in_specs = [
        pl.BlockSpec((TE, 1), lambda t: (t, 0)),        # src (column form)
        pl.BlockSpec((TE, 1), lambda t: (t, 0)),        # dst (column form)
        pl.BlockSpec((1, TE), lambda t: (0, t)),        # dst (row form, scatter)
        pl.BlockSpec((TE, in_dim), lambda t: (t, 0)),   # edge_attr tile
        _resident((1, N)),                               # node ids (row)
        _resident((N, 1)),                               # node ids (col)
        _resident((N, in_dim)),                          # x
        _resident((in_dim, HD)),                         # Wq
        _resident((in_dim, 2 * HD)),                     # Wk | Wv
        _resident((1, HD)),                              # bq
        _resident((1, 2 * HD)),                          # bk | bv
        _resident((in_dim, 2 * HD)),                     # We (permuted)
        _resident((1, 2 * HD)),                          # be (permuted)
        _resident((HD, H)),                              # Aw block matrix
        _resident((H, HD)),                              # head expander
        _resident((HD, HD)),                             # VeRow block-diagonal
    ]
    out_specs = (
        pl.BlockSpec((N, HD), lambda t: (0, 0)),         # h_out: resident acc
        pl.BlockSpec((TE, HD), lambda t: (t, 0)),        # e_out: streamed
    )
    scratch_shapes = [
        pltpu.VMEM((N, HD), bf16),        # Q_h
        pltpu.VMEM((N, 2 * HD), bf16),    # K_h | V_h (fused gather source)
        pltpu.VMEM((TE, 3 * HD), bf16),   # staged scatter RHS
        pltpu.VMEM((N, 3 * HD), f32),     # fused accumulator
    ]

    h_flat, e_pad = pl.pallas_call(
        kernel,
        out_shape=(
            jax.ShapeDtypeStruct((N, HD), f32),
            jax.ShapeDtypeStruct((Em_pad, HD), f32),
        ),
        grid_spec=pltpu.PrefetchScalarGridSpec(
            num_scalar_prefetch=0,
            grid=(n_tiles,),
            in_specs=in_specs,
            out_specs=out_specs,
            scratch_shapes=scratch_shapes,
        ),
        compiler_params=pltpu.CompilerParams(
            # the edge axis carries per-node accumulators -> reduction axis
            # TODO(synk): on v7x, add a leading size-2 "parallel" axis with
            # edges pre-partitioned by destination node to use both TCs.
            dimension_semantics=("arbitrary",),
            vmem_limit_bytes=vmem_limit,
        ),
    )(
        src_col, dst_col, dst_row, ea.astype(bf16),
        nid_row, nid_col, x.astype(bf16),
        params["Wq"].astype(bf16), wkv.astype(bf16),
        params["bq"].astype(f32), bkv.astype(f32),
        we_p.astype(bf16), be_p.astype(f32),
        aw_mat, hexp, verow_bd,
    )

    # Padded e_out rows carry the E bias (identity act); slice them off here.
    return h_flat.reshape(N, H, D), e_pad[:Em]


# -----------------------------------------------------------------------------
# Deterministic parameter construction (xavier-normal style, synthetic)
# -----------------------------------------------------------------------------
def _xavier_normal(key, shape, fan_in, fan_out):
    std = (2.0 / (fan_in + fan_out)) ** 0.5
    return std * jax.random.normal(key, shape, dtype=jnp.float32)


def make_params(key, in_dim, out_dim, num_heads):
    hd = out_dim * num_heads
    ks = jax.random.split(key, 10)
    params = {
        # Linear weights stored as [in, out] (pre-transposed for x @ W)
        "Wq": _xavier_normal(ks[0], (in_dim, hd), in_dim, hd),
        "Wk": _xavier_normal(ks[1], (in_dim, hd), in_dim, hd),
        "Wv": _xavier_normal(ks[2], (in_dim, hd), in_dim, hd),
        "We": _xavier_normal(ks[3], (in_dim, 2 * hd), in_dim, 2 * hd),
        "bq": 0.01 * jax.random.normal(ks[4], (1, hd), dtype=jnp.float32),
        "bk": 0.01 * jax.random.normal(ks[5], (1, hd), dtype=jnp.float32),  # use_bias=True
        "bv": 0.01 * jax.random.normal(ks[6], (1, hd), dtype=jnp.float32),  # use_bias=True
        "be": 0.01 * jax.random.normal(ks[7], (1, 2 * hd), dtype=jnp.float32),
        # Aw: [D, H, 1] ; VeRow: [D, H, D]
        "Aw": _xavier_normal(ks[8], (out_dim, num_heads, 1), num_heads, out_dim),
        "VeRow": _xavier_normal(
            ks[9], (out_dim, num_heads, out_dim), num_heads * out_dim, out_dim * out_dim
        ),
    }
    return params


if __name__ == "__main__":
    key = jax.random.PRNGKey(0)
    n_nodes, n_edges = 8, 16
    in_dim, out_dim, num_heads = 32, 16, 2

    k_x, k_e, k_src, k_dst, k_p = jax.random.split(key, 5)
    x = jax.random.normal(k_x, (n_nodes, in_dim), dtype=jnp.float32)
    edge_attr = jax.random.normal(k_e, (n_edges, in_dim), dtype=jnp.float32)
    src = jax.random.randint(k_src, (n_edges,), 0, n_nodes)
    dst = jax.random.randint(k_dst, (n_edges,), 0, n_nodes)
    edge_index = jnp.stack([src, dst]).astype(jnp.int32)       # [2, Em]

    params = make_params(k_p, in_dim, out_dim, num_heads)

    h_out, e_out = grit_attention(
        x, edge_attr, edge_index, params,
        num_heads=num_heads, out_dim=out_dim, clamp=5.0,
    )
    jax.block_until_ready((h_out, e_out))
    assert h_out.shape == (n_nodes, num_heads, out_dim)
    assert e_out.shape == (n_edges, num_heads * out_dim)
    assert bool(jnp.all(jnp.isfinite(h_out))) and bool(jnp.all(jnp.isfinite(e_out)))
    print("KERNEL_OK")
</pallas_src>

<mosaic_0001>
module attributes {stable_mosaic.version = 11 : i64} {
  func.func @_grit_attn_kernel(%arg0: i32, %arg1: memref<128x1xi32, #tpu.memory_space<vmem>>, %arg2: memref<128x1xi32, #tpu.memory_space<vmem>>, %arg3: memref<1x128xi32, #tpu.memory_space<vmem>>, %arg4: memref<128x32xbf16, #tpu.memory_space<vmem>>, %arg5: memref<1x8xi32, #tpu.memory_space<vmem>>, %arg6: memref<8x1xi32, #tpu.memory_space<vmem>>, %arg7: memref<8x32xbf16, #tpu.memory_space<vmem>>, %arg8: memref<32x32xbf16, #tpu.memory_space<vmem>>, %arg9: memref<32x64xbf16, #tpu.memory_space<vmem>>, %arg10: memref<1x32xf32, #tpu.memory_space<vmem>>, %arg11: memref<1x64xf32, #tpu.memory_space<vmem>>, %arg12: memref<32x64xbf16, #tpu.memory_space<vmem>>, %arg13: memref<1x64xf32, #tpu.memory_space<vmem>>, %arg14: memref<32x2xf32, #tpu.memory_space<vmem>>, %arg15: memref<2x32xf32, #tpu.memory_space<vmem>>, %arg16: memref<32x32xf32, #tpu.memory_space<vmem>>, %arg17: memref<8x32xf32, #tpu.memory_space<vmem>>, %arg18: memref<128x32xf32, #tpu.memory_space<vmem>>, %arg19: memref<8x32xbf16, #tpu.memory_space<vmem>>, %arg20: memref<8x64xbf16, #tpu.memory_space<vmem>>, %arg21: memref<128x96xbf16, #tpu.memory_space<vmem>>, %arg22: memref<8x96xf32, #tpu.memory_space<vmem>>) attributes {dimension_semantics = [#tpu.dimension_semantics<arbitrary>], iteration_bounds = array<i64: 1>, scalar_prefetch = 0 : i64, scratch_operands = 4 : i64, tpu.core_type = #tpu.core_type<tc>, window_params = [{transform_indices = @transform_0, window_bounds = array<i64: 128, 1>}, {transform_indices = @transform_1, window_bounds = array<i64: 128, 1>}, {transform_indices = @transform_2, window_bounds = array<i64: 1, 128>}, {transform_indices = @transform_3, window_bounds = array<i64: 128, 32>}, {pipeline_mode = #tpu.pipeline_mode<synchronous>, transform_indices = @transform_4, window_bounds = array<i64: 1, 8>}, {pipeline_mode = #tpu.pipeline_mode<synchronous>, transform_indices = @transform_5, window_bounds = array<i64: 8, 1>}, {pipeline_mode = #tpu.pipeline_mode<synchronous>, transform_indices = @transform_6, window_bounds = array<i64: 8, 32>}, {pipeline_mode = #tpu.pipeline_mode<synchronous>, transform_indices = @transform_7, window_bounds = array<i64: 32, 32>}, {pipeline_mode = #tpu.pipeline_mode<synchronous>, transform_indices = @transform_8, window_bounds = array<i64: 32, 64>}, {pipeline_mode = #tpu.pipeline_mode<synchronous>, transform_indices = @transform_9, window_bounds = array<i64: 1, 32>}, {pipeline_mode = #tpu.pipeline_mode<synchronous>, transform_indices = @transform_10, window_bounds = array<i64: 1, 64>}, {pipeline_mode = #tpu.pipeline_mode<synchronous>, transform_indices = @transform_11, window_bounds = array<i64: 32, 64>}, {pipeline_mode = #tpu.pipeline_mode<synchronous>, transform_indices = @transform_12, window_bounds = array<i64: 1, 64>}, {pipeline_mode = #tpu.pipeline_mode<synchronous>, transform_indices = @transform_13, window_bounds = array<i64: 32, 2>}, {pipeline_mode = #tpu.pipeline_mode<synchronous>, transform_indices = @transform_14, window_bounds = array<i64: 2, 32>}, {pipeline_mode = #tpu.pipeline_mode<synchronous>, transform_indices = @transform_15, window_bounds = array<i64: 32, 32>}, {pipeline_mode = #tpu.pipeline_mode<synchronous>, transform_indices = @transform_16, window_bounds = array<i64: 8, 32>}, {transform_indices = @transform_17, window_bounds = array<i64: 128, 32>}]} {
    %c0_i32 = arith.constant 0 : i32
    %0 = arith.cmpi eq, %arg0, %c0_i32 : i32
    %1 = arith.extui %0 : i1 to i32
    %c0_i32_0 = arith.constant 0 : i32
    %2 = arith.cmpi ne, %1, %c0_i32_0 : i32
    scf.if %2 {
      %c0_48 = arith.constant 0 : index
      %c0_49 = arith.constant 0 : index
      %78 = vector.load %arg7[%c0_48, %c0_49] : memref<8x32xbf16, #tpu.memory_space<vmem>>, vector<8x32xbf16>
      %c0_50 = arith.constant 0 : index
      %c0_51 = arith.constant 0 : index
      %79 = vector.load %arg8[%c0_50, %c0_51] : memref<32x32xbf16, #tpu.memory_space<vmem>>, vector<32x32xbf16>
      %cst_52 = arith.constant dense<0.000000e+00> : vector<8x32xf32>
      %80 = tpu.matmul %78, %79, %cst_52 {dimension_numbers = #tpu.dot_dimension_numbers<[1], [0], [0], [1], [0, 0, 1, 1], [], []>} : vector<8x32xbf16>, vector<32x32xbf16>, vector<8x32xf32> -> vector<8x32xf32>
      %c0_53 = arith.constant 0 : index
      %c0_54 = arith.constant 0 : index
      %81 = vector.load %arg10[%c0_53, %c0_54] : memref<1x32xf32, #tpu.memory_space<vmem>>, vector<1x32xf32>
      %82 = vector.broadcast %81 : vector<1x32xf32> to vector<8x32xf32>
      %83 = arith.addf %80, %82 : vector<8x32xf32>
      %84 = arith.truncf %83 : vector<8x32xf32> to vector<8x32xbf16>
      %c0_55 = arith.constant 0 : index
      %c0_56 = arith.constant 0 : index
      %85 = vector.load %arg19[%c0_55, %c0_56] : memref<8x32xbf16, #tpu.memory_space<vmem>>, vector<8x32xbf16>
      tpu.vector_store %arg19[%c0_55, %c0_56], %84 {strides = array<i32>} : memref<8x32xbf16, #tpu.memory_space<vmem>>, vector<8x32xbf16>,
      %c0_57 = arith.constant 0 : index
      %c0_58 = arith.constant 0 : index
      %86 = vector.load %arg9[%c0_57, %c0_58] : memref<32x64xbf16, #tpu.memory_space<vmem>>, vector<32x64xbf16>
      %cst_59 = arith.constant dense<0.000000e+00> : vector<8x64xf32>
      %87 = tpu.matmul %78, %86, %cst_59 {dimension_numbers = #tpu.dot_dimension_numbers<[1], [0], [0], [1], [0, 0, 1, 1], [], []>} : vector<8x32xbf16>, vector<32x64xbf16>, vector<8x64xf32> -> vector<8x64xf32>
      %c0_60 = arith.constant 0 : index
      %c0_61 = arith.constant 0 : index
      %88 = vector.load %arg11[%c0_60, %c0_61] : memref<1x64xf32, #tpu.memory_space<vmem>>, vector<1x64xf32>
      %89 = vector.broadcast %88 : vector<1x64xf32> to vector<8x64xf32>
      %90 = arith.addf %87, %89 : vector<8x64xf32>
      %91 = arith.truncf %90 : vector<8x64xf32> to vector<8x64xbf16>
      %c0_62 = arith.constant 0 : index
      %c0_63 = arith.constant 0 : index
      %92 = vector.load %arg20[%c0_62, %c0_63] : memref<8x64xbf16, #tpu.memory_space<vmem>>, vector<8x64xbf16>
      tpu.vector_store %arg20[%c0_62, %c0_63], %91 {strides = array<i32>} : memref<8x64xbf16, #tpu.memory_space<vmem>>, vector<8x64xbf16>,
      %cst_64 = arith.constant 0.000000e+00 : f32
      %93 = vector.broadcast %cst_64 : f32 to vector<8x96xf32>
      %c0_65 = arith.constant 0 : index
      %c0_66 = arith.constant 0 : index
      %94 = vector.load %arg22[%c0_65, %c0_66] : memref<8x96xf32, #tpu.memory_space<vmem>>, vector<8x96xf32>
      tpu.vector_store %arg22[%c0_65, %c0_66], %93 {strides = array<i32>} : memref<8x96xf32, #tpu.memory_space<vmem>>, vector<8x96xf32>,
    } else {
    }
    %c0 = arith.constant 0 : index
    %c0_1 = arith.constant 0 : index
    %3 = vector.load %arg5[%c0, %c0_1] : memref<1x8xi32, #tpu.memory_space<vmem>>, vector<1x8xi32>
    %c0_2 = arith.constant 0 : index
    %c0_3 = arith.constant 0 : index
    %4 = vector.load %arg1[%c0_2, %c0_3] : memref<128x1xi32, #tpu.memory_space<vmem>>, vector<128x1xi32>
    %5 = vector.broadcast %4 : vector<128x1xi32> to vector<128x8xi32>
    %6 = vector.broadcast %3 : vector<1x8xi32> to vector<128x8xi32>
    %7 = arith.cmpi eq, %5, %6 : vector<128x8xi32>
    %8 = arith.extui %7 : vector<128x8xi1> to vector<128x8xi32>
    %9 = arith.sitofp %8 : vector<128x8xi32> to vector<128x8xf32>
    %10 = arith.truncf %9 : vector<128x8xf32> to vector<128x8xbf16>
    %c0_4 = arith.constant 0 : index
    %c0_5 = arith.constant 0 : index
    %11 = vector.load %arg2[%c0_4, %c0_5] : memref<128x1xi32, #tpu.memory_space<vmem>>, vector<128x1xi32>
    %12 = vector.broadcast %11 : vector<128x1xi32> to vector<128x8xi32>
    %13 = vector.broadcast %3 : vector<1x8xi32> to vector<128x8xi32>
    %14 = arith.cmpi eq, %12, %13 : vector<128x8xi32>
    %15 = arith.extui %14 : vector<128x8xi1> to vector<128x8xi32>
    %16 = arith.sitofp %15 : vector<128x8xi32> to vector<128x8xf32>
    %17 = arith.truncf %16 : vector<128x8xf32> to vector<128x8xbf16>
    %c0_6 = arith.constant 0 : index
    %c0_7 = arith.constant 0 : index
    %18 = vector.load %arg6[%c0_6, %c0_7] : memref<8x1xi32, #tpu.memory_space<vmem>>, vector<8x1xi32>
    %c0_8 = arith.constant 0 : index
    %c0_9 = arith.constant 0 : index
    %19 = vector.load %arg3[%c0_8, %c0_9] : memref<1x128xi32, #tpu.memory_space<vmem>>, vector<1x128xi32>
    %20 = vector.broadcast %18 : vector<8x1xi32> to vector<8x128xi32>
    %21 = vector.broadcast %19 : vector<1x128xi32> to vector<8x128xi32>
    %22 = arith.cmpi eq, %20, %21 : vector<8x128xi32>
    %23 = arith.extui %22 : vector<8x128xi1> to vector<8x128xi32>
    %24 = arith.sitofp %23 : vector<8x128xi32> to vector<8x128xf32>
    %25 = arith.truncf %24 : vector<8x128xf32> to vector<8x128xbf16>
    %c0_10 = arith.constant 0 : index
    %c0_11 = arith.constant 0 : index
    %26 = vector.load %arg20[%c0_10, %c0_11] : memref<8x64xbf16, #tpu.memory_space<vmem>>, vector<8x64xbf16>
    %cst = arith.constant dense<0.000000e+00> : vector<128x64xf32>
    %27 = tpu.matmul %10, %26, %cst {dimension_numbers = #tpu.dot_dimension_numbers<[1], [0], [0], [1], [0, 0, 1, 1], [], []>} : vector<128x8xbf16>, vector<8x64xbf16>, vector<128x64xf32> -> vector<128x64xf32>
    %c0_12 = arith.constant 0 : index
    %c0_13 = arith.constant 0 : index
    %28 = vector.load %arg19[%c0_12, %c0_13] : memref<8x32xbf16, #tpu.memory_space<vmem>>, vector<8x32xbf16>
    %cst_14 = arith.constant dense<0.000000e+00> : vector<128x32xf32>
    %29 = tpu.matmul %17, %28, %cst_14 {dimension_numbers = #tpu.dot_dimension_numbers<[1], [0], [0], [1], [0, 0, 1, 1], [], []>} : vector<128x8xbf16>, vector<8x32xbf16>, vector<128x32xf32> -> vector<128x32xf32>
    %c0_15 = arith.constant 0 : index
    %c0_16 = arith.constant 0 : index
    %30 = vector.load %arg4[%c0_15, %c0_16] : memref<128x32xbf16, #tpu.memory_space<vmem>>, vector<128x32xbf16>
    %c0_17 = arith.constant 0 : index
    %c0_18 = arith.constant 0 : index
    %31 = vector.load %arg12[%c0_17, %c0_18] : memref<32x64xbf16, #tpu.memory_space<vmem>>, vector<32x64xbf16>
    %cst_19 = arith.constant dense<0.000000e+00> : vector<128x64xf32>
    %32 = tpu.matmul %30, %31, %cst_19 {dimension_numbers = #tpu.dot_dimension_numbers<[1], [0], [0], [1], [0, 0, 1, 1], [], []>} : vector<128x32xbf16>, vector<32x64xbf16>, vector<128x64xf32> -> vector<128x64xf32>
    %c0_20 = arith.constant 0 : index
    %c0_21 = arith.constant 0 : index
    %33 = vector.load %arg13[%c0_20, %c0_21] : memref<1x64xf32, #tpu.memory_space<vmem>>, vector<1x64xf32>
    %34 = vector.broadcast %33 : vector<1x64xf32> to vector<128x64xf32>
    %35 = arith.addf %32, %34 : vector<128x64xf32>
    %36 = vector.extract_strided_slice %27 {offsets = [0, 0], sizes = [128, 32], strides = [1, 1]} : vector<128x64xf32> to vector<128x32xf32>
    %37 = arith.addf %36, %29 : vector<128x32xf32>
    %38 = vector.extract_strided_slice %35 {offsets = [0, 0], sizes = [128, 32], strides = [1, 1]} : vector<128x64xf32> to vector<128x32xf32>
    %39 = arith.mulf %37, %38 : vector<128x32xf32>
    %cst_22 = arith.constant 0.000000e+00 : f32
    %40 = vector.broadcast %cst_22 : f32 to vector<128x32xf32>
    %41 = arith.maximumf %39, %40 : vector<128x32xf32>
    %42 = math.sqrt %41 : vector<128x32xf32>
    %cst_23 = arith.constant 0.000000e+00 : f32
    %43 = vector.broadcast %cst_23 : f32 to vector<128x32xf32>
    %44 = arith.subf %43, %39 : vector<128x32xf32>
    %cst_24 = arith.constant 0.000000e+00 : f32
    %45 = vector.broadcast %cst_24 : f32 to vector<128x32xf32>
    %46 = arith.maximumf %44, %45 : vector<128x32xf32>
    %47 = math.sqrt %46 : vector<128x32xf32>
    %48 = arith.subf %42, %47 : vector<128x32xf32>
    %49 = vector.extract_strided_slice %35 {offsets = [0, 32], sizes = [128, 32], strides = [1, 1]} : vector<128x64xf32> to vector<128x32xf32>
    %50 = arith.addf %48, %49 : vector<128x32xf32>
    %c0_25 = arith.constant 0 : index
    %c0_26 = arith.constant 0 : index
    %51 = vector.load %arg18[%c0_25, %c0_26] : memref<128x32xf32, #tpu.memory_space<vmem>>, vector<128x32xf32>
    tpu.vector_store %arg18[%c0_25, %c0_26], %50 {strides = array<i32>} : memref<128x32xf32, #tpu.memory_space<vmem>>, vector<128x32xf32>,
    %c0_27 = arith.constant 0 : index
    %c0_28 = arith.constant 0 : index
    %52 = vector.load %arg14[%c0_27, %c0_28] : memref<32x2xf32, #tpu.memory_space<vmem>>, vector<32x2xf32>
    %cst_29 = arith.constant dense<0.000000e+00> : vector<128x2xf32>
    %53 = tpu.matmul %50, %52, %cst_29 {dimension_numbers = #tpu.dot_dimension_numbers<[1], [0], [0], [1], [0, 0, 1, 1], [], []>} : vector<128x32xf32>, vector<32x2xf32>, vector<128x2xf32> -> vector<128x2xf32>
    %cst_30 = arith.constant -5.000000e+00 : f32
    %cst_31 = arith.constant 5.000000e+00 : f32
    %54 = vector.broadcast %cst_30 : f32 to vector<128x2xf32>
    %55 = arith.maximumf %54, %53 : vector<128x2xf32>
    %56 = vector.broadcast %cst_31 : f32 to vector<128x2xf32>
    %57 = arith.minimumf %56, %55 : vector<128x2xf32>
    %58 = math.exp %57 : vector<128x2xf32>
    %c0_32 = arith.constant 0 : index
    %c0_33 = arith.constant 0 : index
    %59 = vector.load %arg15[%c0_32, %c0_33] : memref<2x32xf32, #tpu.memory_space<vmem>>, vector<2x32xf32>
    %cst_34 = arith.constant dense<0.000000e+00> : vector<128x32xf32>
    %60 = tpu.matmul %58, %59, %cst_34 {dimension_numbers = #tpu.dot_dimension_numbers<[1], [0], [0], [1], [0, 0, 1, 1], [], []>} : vector<128x2xf32>, vector<2x32xf32>, vector<128x32xf32> -> vector<128x32xf32>
    %61 = vector.extract_strided_slice %27 {offsets = [0, 32], sizes = [128, 32], strides = [1, 1]} : vector<128x64xf32> to vector<128x32xf32>
    %62 = arith.mulf %61, %60 : vector<128x32xf32>
    %63 = arith.truncf %62 : vector<128x32xf32> to vector<128x32xbf16>
    %c0_35 = arith.constant 0 : index
    %c0_36 = arith.constant 0 : index
    %64 = vector.load %arg21[%c0_35, %c0_36] : memref<128x96xbf16, #tpu.memory_space<vmem>>, vector<128x32xbf16>
    tpu.vector_store %arg21[%c0_35, %c0_36], %63 {strides = array<i32>} : memref<128x96xbf16, #tpu.memory_space<vmem>>, vector<128x32xbf16>,
    %65 = arith.mulf %50, %60 : vector<128x32xf32>
    %66 = arith.truncf %65 : vector<128x32xf32> to vector<128x32xbf16>
    %c0_37 = arith.constant 0 : index
    %c32 = arith.constant 32 : index
    %67 = vector.load %arg21[%c0_37, %c32] : memref<128x96xbf16, #tpu.memory_space<vmem>>, vector<128x32xbf16>
    tpu.vector_store %arg21[%c0_37, %c32], %66 {strides = array<i32>} : memref<128x96xbf16, #tpu.memory_space<vmem>>, vector<128x32xbf16>,
    %68 = arith.truncf %60 : vector<128x32xf32> to vector<128x32xbf16>
    %c0_38 = arith.constant 0 : index
    %c64 = arith.constant 64 : index
    %69 = vector.load %arg21[%c0_38, %c64] : memref<128x96xbf16, #tpu.memory_space<vmem>>, vector<128x32xbf16>
    tpu.vector_store %arg21[%c0_38, %c64], %68 {strides = array<i32>} : memref<128x96xbf16, #tpu.memory_space<vmem>>, vector<128x32xbf16>,
    %c0_39 = arith.constant 0 : index
    %c0_40 = arith.constant 0 : index
    %70 = vector.load %arg22[%c0_39, %c0_40] : memref<8x96xf32, #tpu.memory_space<vmem>>, vector<8x96xf32>
    %c0_41 = arith.constant 0 : index
    %c0_42 = arith.constant 0 : index
    %71 = vector.load %arg21[%c0_41, %c0_42] : memref<128x96xbf16, #tpu.memory_space<vmem>>, vector<128x96xbf16>
    %cst_43 = arith.constant dense<0.000000e+00> : vector<8x96xf32>
    %72 = tpu.matmul %25, %71, %cst_43 {dimension_numbers = #tpu.dot_dimension_numbers<[1], [0], [0], [1], [0, 0, 1, 1], [], []>} : vector<8x128xbf16>, vector<128x96xbf16>, vector<8x96xf32> -> vector<8x96xf32>
    %73 = arith.addf %70, %72 : vector<8x96xf32>
    %c0_44 = arith.constant 0 : index
    %c0_45 = arith.constant 0 : index
    %74 = vector.load %arg22[%c0_44, %c0_45] : memref<8x96xf32, #tpu.memory_space<vmem>>, vector<8x96xf32>
    tpu.vector_store %arg22[%c0_44, %c0_45], %73 {strides = array<i32>} : memref<8x96xf32, #tpu.memory_space<vmem>>, vector<8x96xf32>,
    %c0_i32_46 = arith.constant 0 : i32
    %75 = arith.cmpi eq, %arg0, %c0_i32_46 : i32
    %76 = arith.extui %75 : i1 to i32
    %c0_i32_47 = arith.constant 0 : i32
    %77 = arith.cmpi ne, %76, %c0_i32_47 : i32
    scf.if %77 {
      %c0_48 = arith.constant 0 : index
      %c0_49 = arith.constant 0 : index
      %78 = vector.load %arg22[%c0_48, %c0_49] : memref<8x96xf32, #tpu.memory_space<vmem>>, vector<8x96xf32>
      %79 = vector.extract_strided_slice %78 {offsets = [0, 64], sizes = [8, 32], strides = [1, 1]} : vector<8x96xf32> to vector<8x32xf32>
      %cst_50 = arith.constant 1.000000e-16 : f32
      %80 = vector.broadcast %cst_50 : f32 to vector<8x32xf32>
      %81 = arith.addf %79, %80 : vector<8x32xf32>
      %cst_51 = arith.constant 1.000000e+00 : f32
      %82 = vector.broadcast %cst_51 : f32 to vector<8x32xf32>
      %83 = arith.divf %82, %81 : vector<8x32xf32>
      %84 = vector.extract_strided_slice %78 {offsets = [0, 0], sizes = [8, 32], strides = [1, 1]} : vector<8x96xf32> to vector<8x32xf32>
      %85 = arith.mulf %84, %83 : vector<8x32xf32>
      %86 = vector.extract_strided_slice %78 {offsets = [0, 32], sizes = [8, 32], strides = [1, 1]} : vector<8x96xf32> to vector<8x32xf32>
      %87 = arith.mulf %86, %83 : vector<8x32xf32>
      %c0_52 = arith.constant 0 : index
      %c0_53 = arith.constant 0 : index
      %88 = vector.load %arg16[%c0_52, %c0_53] : memref<32x32xf32, #tpu.memory_space<vmem>>, vector<32x32xf32>
      %cst_54 = arith.constant dense<0.000000e+00> : vector<8x32xf32>
      %89 = tpu.matmul %87, %88, %cst_54 {dimension_numbers = #tpu.dot_dimension_numbers<[1], [0], [0], [1], [0, 0, 1, 1], [], []>} : vector<8x32xf32>, vector<32x32xf32>, vector<8x32xf32> -> vector<8x32xf32>
      %90 = arith.addf %85, %89 : vector<8x32xf32>
      %c0_55 = arith.constant 0 : index
      %c0_56 = arith.constant 0 : index
      %91 = vector.load %arg17[%c0_55, %c0_56] : memref<8x32xf32, #tpu.memory_space<vmem>>, vector<8x32xf32>
      tpu.vector_store %arg17[%c0_55, %c0_56], %90 {strides = array<i32>} : memref<8x32xf32, #tpu.memory_space<vmem>>, vector<8x32xf32>,
    } else {
    }
    return
  }
  func.func @transform_0(%arg0: i32) -> (i32, i32) {
    %c0_i32 = arith.constant 0 : i32
    %c0_i32_0 = arith.constant 0 : i32
    return %arg0, %c0_i32 : i32, i32
  }
  func.func @transform_1(%arg0: i32) -> (i32, i32) {
    %c0_i32 = arith.constant 0 : i32
    %c0_i32_0 = arith.constant 0 : i32
    return %arg0, %c0_i32 : i32, i32
  }
  func.func @transform_2(%arg0: i32) -> (i32, i32) {
    %c0_i32 = arith.constant 0 : i32
    %c0_i32_0 = arith.constant 0 : i32
    return %c0_i32, %arg0 : i32, i32
  }
  func.func @transform_3(%arg0: i32) -> (i32, i32) {
    %c0_i32 = arith.constant 0 : i32
    %c0_i32_0 = arith.constant 0 : i32
    return %arg0, %c0_i32 : i32, i32
  }
  func.func @transform_4(%arg0: i32) -> (i32, i32) {
    %c0_i32 = arith.constant 0 : i32
    %c0_i32_0 = arith.constant 0 : i32
    %c0_i32_1 = arith.constant 0 : i32
    return %c0_i32, %c0_i32_0 : i32, i32
  }
  func.func @transform_5(%arg0: i32) -> (i32, i32) {
    %c0_i32 = arith.constant 0 : i32
    %c0_i32_0 = arith.constant 0 : i32
    %c0_i32_1 = arith.constant 0 : i32
    return %c0_i32, %c0_i32_0 : i32, i32
  }
  func.func @transform_6(%arg0: i32) -> (i32, i32) {
    %c0_i32 = arith.constant 0 : i32
    %c0_i32_0 = arith.constant 0 : i32
    %c0_i32_1 = arith.constant 0 : i32
    return %c0_i32, %c0_i32_0 : i32, i32
  }
  func.func @transform_7(%arg0: i32) -> (i32, i32) {
    %c0_i32 = arith.constant 0 : i32
    %c0_i32_0 = arith.constant 0 : i32
    %c0_i32_1 = arith.constant 0 : i32
    return %c0_i32, %c0_i32_0 : i32, i32
  }
  func.func @transform_8(%arg0: i32) -> (i32, i32) {
    %c0_i32 = arith.constant 0 : i32
    %c0_i32_0 = arith.constant 0 : i32
    %c0_i32_1 = arith.constant 0 : i32
    return %c0_i32, %c0_i32_0 : i32, i32
  }
  func.func @transform_9(%arg0: i32) -> (i32, i32) {
    %c0_i32 = arith.constant 0 : i32
    %c0_i32_0 = arith.constant 0 : i32
    %c0_i32_1 = arith.constant 0 : i32
    return %c0_i32, %c0_i32_0 : i32, i32
  }
  func.func @transform_10(%arg0: i32) -> (i32, i32) {
    %c0_i32 = arith.constant 0 : i32
    %c0_i32_0 = arith.constant 0 : i32
    %c0_i32_1 = arith.constant 0 : i32
    return %c0_i32, %c0_i32_0 : i32, i32
  }
  func.func @transform_11(%arg0: i32) -> (i32, i32) {
    %c0_i32 = arith.constant 0 : i32
    %c0_i32_0 = arith.constant 0 : i32
    %c0_i32_1 = arith.constant 0 : i32
    return %c0_i32, %c0_i32_0 : i32, i32
  }
  func.func @transform_12(%arg0: i32) -> (i32, i32) {
    %c0_i32 = arith.constant 0 : i32
    %c0_i32_0 = arith.constant 0 : i32
    %c0_i32_1 = arith.constant 0 : i32
    return %c0_i32, %c0_i32_0 : i32, i32
  }
  func.func @transform_13(%arg0: i32) -> (i32, i32) {
    %c0_i32 = arith.constant 0 : i32
    %c0_i32_0 = arith.constant 0 : i32
    %c0_i32_1 = arith.constant 0 : i32
    return %c0_i32, %c0_i32_0 : i32, i32
  }
  func.func @transform_14(%arg0: i32) -> (i32, i32) {
    %c0_i32 = arith.constant 0 : i32
    %c0_i32_0 = arith.constant 0 : i32
    %c0_i32_1 = arith.constant 0 : i32
    return %c0_i32, %c0_i32_0 : i32, i32
  }
  func.func @transform_15(%arg0: i32) -> (i32, i32) {
    %c0_i32 = arith.constant 0 : i32
    %c0_i32_0 = arith.constant 0 : i32
    %c0_i32_1 = arith.constant 0 : i32
    return %c0_i32, %c0_i32_0 : i32, i32
  }
  func.func @transform_16(%arg0: i32) -> (i32, i32) {
    %c0_i32 = arith.constant 0 : i32
    %c0_i32_0 = arith.constant 0 : i32
    %c0_i32_1 = arith.constant 0 : i32
    return %c0_i32, %c0_i32_0 : i32, i32
  }
  func.func @transform_17(%arg0: i32) -> (i32, i32) {
    %c0_i32 = arith.constant 0 : i32
    %c0_i32_0 = arith.constant 0 : i32
    return %arg0, %c0_i32 : i32, i32
  }
}

</mosaic_0001>

<llo_original>
// kernel: tpu_custom_call.1
$region0: #{tpu_custom_call.1}
  #allocation0 [shape = 'u32[]', space=smem, size = 0x4, offset = 0x4, fixed_abs, tag = 'smem constant byte address 0x4 - core index']
  #allocation1 [shape = 'u32[144,128]{1,0:T(1,128)}', space=vmem, size = 0x12000, scoped, tag = 'internal scratch']
  #allocation2 [shape = 'bf16[8,32]{1,0:T(8,128)(2,1)}', space=vmem, size = 0x800, scoped, tag = 'scratch operand']
  #allocation3 [shape = 'bf16[8,64]{1,0:T(8,128)(2,1)}', space=vmem, size = 0x800, scoped, tag = 'scratch operand']
  #allocation4 [shape = 'bf16[128,96]{1,0:T(8,128)(2,1)}', space=vmem, size = 0x8000, scoped, tag = 'scratch operand']
  #allocation5 [shape = 'f32[8,96]{1,0:T(8,128)}', space=vmem, size = 0x1000, scoped, tag = 'scratch operand']
  %s0 = inlined_call_operand.vmem [shape: s32[128,1], index: 0, kind: input, shape index: {}]
  %s1 = inlined_call_operand.vmem [shape: s32[128,1], index: 1, kind: input, shape index: {}]
  %s2 = inlined_call_operand.vmem [shape: s32[1,128], index: 2, kind: input, shape index: {}]
  %s3 = inlined_call_operand.vmem [shape: bf16[128,32], index: 3, kind: input, shape index: {}]
  %s4 = inlined_call_operand.vmem [shape: s32[1,8], index: 4, kind: input, shape index: {}]
  %s5 = inlined_call_operand.vmem [shape: s32[8,1], index: 5, kind: input, shape index: {}]
  %s6 = inlined_call_operand.vmem [shape: bf16[8,32], index: 6, kind: input, shape index: {}]
  %s7 = inlined_call_operand.vmem [shape: bf16[32,32], index: 7, kind: input, shape index: {}]
  %s8 = inlined_call_operand.vmem [shape: bf16[32,64], index: 8, kind: input, shape index: {}]
  %s9 = inlined_call_operand.vmem [shape: f32[1,32], index: 9, kind: input, shape index: {}]
  %s10 = inlined_call_operand.vmem [shape: f32[1,64], index: 10, kind: input, shape index: {}]
  %s11 = inlined_call_operand.vmem [shape: bf16[32,64], index: 11, kind: input, shape index: {}]
  %s12 = inlined_call_operand.vmem [shape: f32[1,64], index: 12, kind: input, shape index: {}]
  %s13 = inlined_call_operand.vmem [shape: f32[32,2], index: 13, kind: input, shape index: {}]
  %s14 = inlined_call_operand.vmem [shape: f32[2,32], index: 14, kind: input, shape index: {}]
  %s15 = inlined_call_operand.vmem [shape: f32[32,32], index: 15, kind: input, shape index: {}]
  %s16 = inlined_call_operand.hbm [shape: f32[8,32], index: 16, kind: output, shape index: {0}]
  %s17 = inlined_call_operand.vmem [shape: f32[128,32], index: 17, kind: output, shape index: {1}]
  %18 = xla_tuple %s16, %s17
  %s19 = sld [smem:[#allocation0]]
  $region90: #{tpu_custom_call.1} parent=0
    _
  %s21 = ssub.s32 1, %s19
  %s22 = scalar_select 0, %s21, %s19
  $region1: #{tpu_custom_call.1} parent=0
    #allocation6 [shape = 'u8[4096]{0}', space=vmem, size = 0x1000, scoped, tag = 'output window, operand 0, single buffered']
    #allocation7 [shape = 's32[1]{0}', space=sflag, size = 0x4, scoped, tag = 'scoped memory for tpu_custom_call.1']
    %23 = vsyncpa [#allocation7], 0
    // Predicated region
    $region2: #{tpu_custom_call.1} parent=1 // pred_check
      _
    $region3: #{tpu_custom_call.1} parent=1 // pred_check_branch
      %25 = sbr.rel (0) target = $region5
    $region4: #{tpu_custom_call.1} parent=1 // pred_region
      _
    $region5: #{tpu_custom_call.1} parent=1 // pred_fallthru
      _
    // Predicated region
    $region6: #{tpu_custom_call.1} parent=1 // pred_check
      _
    $region7: #{tpu_custom_call.1} parent=1 // pred_check_branch
      %27 = sbr.rel (0) target = $region9
    $region8: #{tpu_custom_call.1} parent=1 // pred_region
      _
    $region9: #{tpu_custom_call.1} parent=1 // pred_fallthru
      _
    // Predicated region
    $region10: #{tpu_custom_call.1} parent=1 // pred_check
      _
    $region11: #{tpu_custom_call.1} parent=1 // pred_check_branch
      %29 = sbr.rel (0) target = $region13
    $region12: #{tpu_custom_call.1} parent=1 // pred_region
      _
    $region13: #{tpu_custom_call.1} parent=1 // pred_fallthru
      _
    // Predicated region
    $region14: #{tpu_custom_call.1} parent=1 // pred_check
      _
    $region15: #{tpu_custom_call.1} parent=1 // pred_check_branch
      %31 = sbr.rel (0) target = $region17
    $region16: #{tpu_custom_call.1} parent=1 // pred_region
      _
    $region17: #{tpu_custom_call.1} parent=1 // pred_fallthru
      _
    // Predicated region
    $region18: #{tpu_custom_call.1} parent=1 // pred_check
      _
    $region19: #{tpu_custom_call.1} parent=1 // pred_check_branch
      %33 = sbr.rel (0) target = $region21
    $region20: #{tpu_custom_call.1} parent=1 // pred_region
      _
    $region21: #{tpu_custom_call.1} parent=1 // pred_fallthru
      _
    // Predicated region
    $region22: #{tpu_custom_call.1} parent=1 // pred_check
      _
    $region23: #{tpu_custom_call.1} parent=1 // pred_check_branch
      %35 = sbr.rel (0) target = $region25
    $region24: #{tpu_custom_call.1} parent=1 // pred_region
      _
    $region25: #{tpu_custom_call.1} parent=1 // pred_fallthru
      _
    // Predicated region
    $region26: #{tpu_custom_call.1} parent=1 // pred_check
      _
    $region27: #{tpu_custom_call.1} parent=1 // pred_check_branch
      %37 = sbr.rel (0) target = $region29
    $region28: #{tpu_custom_call.1} parent=1 // pred_region
      _
    $region29: #{tpu_custom_call.1} parent=1 // pred_fallthru
      _
    // Predicated region
    $region30: #{tpu_custom_call.1} parent=1 // pred_check
      _
    $region31: #{tpu_custom_call.1} parent=1 // pred_check_branch
      %39 = sbr.rel (0) target = $region33
    $region32: #{tpu_custom_call.1} parent=1 // pred_region
      _
    $region33: #{tpu_custom_call.1} parent=1 // pred_fallthru
      _
    // Predicated region
    $region34: #{tpu_custom_call.1} parent=1 // pred_check
      _
    $region35: #{tpu_custom_call.1} parent=1 // pred_check_branch
      %41 = sbr.rel (0) target = $region37
    $region36: #{tpu_custom_call.1} parent=1 // pred_region
      _
    $region37: #{tpu_custom_call.1} parent=1 // pred_fallthru
      _
    // Predicated region
    $region38: #{tpu_custom_call.1} parent=1 // pred_check
      _
    $region39: #{tpu_custom_call.1} parent=1 // pred_check_branch
      %43 = sbr.rel (0) target = $region41
    $region40: #{tpu_custom_call.1} parent=1 // pred_region
      _
    $region41: #{tpu_custom_call.1} parent=1 // pred_fallthru
      _
    // Predicated region
    $region42: #{tpu_custom_call.1} parent=1 // pred_check
      _
    $region43: #{tpu_custom_call.1} parent=1 // pred_check_branch
      %45 = sbr.rel (0) target = $region45
    $region44: #{tpu_custom_call.1} parent=1 // pred_region
      _
    $region45: #{tpu_custom_call.1} parent=1 // pred_fallthru
      _
    // Predicated region
    $region46: #{tpu_custom_call.1} parent=1 // pred_check
      _
    $region47: #{tpu_custom_call.1} parent=1 // pred_check_branch
      %47 = sbr.rel (0) target = $region49
    $region48: #{tpu_custom_call.1} parent=1 // pred_region
      _
    $region49: #{tpu_custom_call.1} parent=1 // pred_fallthru
      _
    // Predicated region
    $region50: #{tpu_custom_call.1} parent=1 // pred_check
      _
    $region51: #{tpu_custom_call.1} parent=1 // pred_check_branch
      %49 = sbr.rel (0) target = $region53
    $region52: #{tpu_custom_call.1} parent=1 // pred_region
      _
    $region53: #{tpu_custom_call.1} parent=1 // pred_fallthru
      _
    // Predicated region
    $region54: #{tpu_custom_call.1} parent=1 // pred_check
      _
    $region55: #{tpu_custom_call.1} parent=1 // pred_check_branch
      %51 = sbr.rel (0) target = $region57
    $region56: #{tpu_custom_call.1} parent=1 // pred_region
      _
    $region57: #{tpu_custom_call.1} parent=1 // pred_fallthru
      _
    // Predicated region
    $region58: #{tpu_custom_call.1} parent=1 // pred_check
      _
    $region59: #{tpu_custom_call.1} parent=1 // pred_check_branch
      %53 = sbr.rel (0) target = $region61
    $region60: #{tpu_custom_call.1} parent=1 // pred_region
      _
    $region61: #{tpu_custom_call.1} parent=1 // pred_fallthru
      _
    // Predicated region
    $region62: #{tpu_custom_call.1} parent=1 // pred_check
      _
    $region63: #{tpu_custom_call.1} parent=1 // pred_check_branch
      %55 = sbr.rel (0) target = $region65
    $region64: #{tpu_custom_call.1} parent=1 // pred_region
      _
    $region65: #{tpu_custom_call.1} parent=1 // pred_fallthru
      _
    %p57 = scmp.eq.s32.totalorder 0, 0
    // Predicated region
    $region66: #{tpu_custom_call.1} parent=1 // pred_check
      %p58 = pneg %p57
    $region67: #{tpu_custom_call.1} parent=1 // pred_check_branch
      %60 = sbr.rel (%p58) target = $region69
    $region68: #{tpu_custom_call.1} parent=1 // pred_region
      %v61 = vld [vmem:[%s6] sm:$0xf]
      %v62 = vld [vmem:[%s7] sm:$0xf]
      %v63 = vld [vmem:[%s7 + $0x4] sm:$0xf]
      %v64 = vld [vmem:[%s7 + $0x8] sm:$0xf]
      %v65 = vld [vmem:[%s7 + $0xc] sm:$0xf]
      %v66 = vld [vmem:[%s9] sm:$0x1]
      %v68 = vlaneseq
      %v69 = vshrl.u32 %v68, 7
      %v70 = vsub.s32 0, %v69
      %v71 = vrot.slane %v66, %v70
      %v77 = vunpack.c.l.b16 %v62
      %v78 = vunpack.c.l.b16 %v63
      %v79 = vunpack.c.l.b16 %v64
      %v80 = vunpack.c.l.b16 %v65
      %v81 = vpack.c.b16 %v78, %v77
      %v82 = vpack.c.b16 %v80, %v79
      %vm85 = vcmask 261120
      %v87 = vsel %vm85, %v61, 0
      %89 = vmatprep.subr.bf16.mxu0 0
      %90 = vmatpush1.bf16.msra.mxu0 0
      %91 = vmatprep.subr.bf16.mxu0 0
      %92 = vmatpush1.bf16.msra.mxu0 0
      %93 = vmatprep.subr.bf16.mxu0 0
      %94 = vmatpush1.bf16.msra.mxu0 0
      %95 = vmatprep.subr.bf16.mxu0 0
      %96 = vmatpush1.bf16.msra.mxu0 0
      %97 = vmatprep.subr.bf16.mxu0 0
      %98 = vmatpush1.bf16.msra.mxu0 0
      %99 = vmatprep.subr.bf16.mxu0 0
      %100 = vmatpush1.bf16.msra.mxu0 0
      %101 = vmatprep.subr.bf16.mxu0 0
      %102 = vmatpush1.bf16.msra.mxu0 %v82
      %103 = vmatprep.subr.bf16.mxu0 0
      %104 = vmatpush1.bf16.msra.mxu0 %v81
      %105 = vmatprep.subr.bf16.mxu0 0
      %106 = vmatpush2.bf16.msra.mxu0 0
      %107 = vmatprep.subr.bf16.mxu0 0
      %108 = vmatpush2.bf16.msra.mxu0 0
      %109 = vmatprep.subr.bf16.mxu0 0
      %110 = vmatpush2.bf16.msra.mxu0 0
      %111 = vmatprep.subr.bf16.mxu0 0
      %112 = vmatpush2.bf16.msra.mxu0 0
      %113 = vmatprep.subr.bf16.mxu0 0
      %114 = vmatpush2.bf16.msra.mxu0 0
      %115 = vmatprep.subr.bf16.mxu0 0
      %116 = vmatpush2.bf16.msra.mxu0 0
      %117 = vmatprep.subr.bf16.mxu0 0
      %118 = vmatpush2.bf16.msra.mxu0 0
      %119 = vmatprep.subr.bf16.mxu0 0
      %120 = vmatpush2.bf16.msra.mxu0 0
      %121 = vmatprep.mubr.bf16.mxu0 0
      %122 = vmatmul.mubr.bf16.gmra.mxu0 %v87
      %v123 = vpop.f32.mrf.mxu0
      %v124 = vadd.f32 %v71, %v123
      %v125 = vpop.f32.mrf.mxu0
      %v126 = vpop.f32.mrf.mxu0
      %v127 = vpop.f32.mrf.mxu0
      %128 = vdwg.mxu0
      %v129 = vpack.c.bf16 %v124, %v124
      %vm130 = vcmask 257024
      %131 = vst.msk [vmem:[#allocation2] sm:$0xf] %vm130, %v129
      %v132 = vld [vmem:[%s8] sm:$0xf]
      %v133 = vld [vmem:[%s8 + $0x4] sm:$0xf]
      %v134 = vld [vmem:[%s8 + $0x8] sm:$0xf]
      %v135 = vld [vmem:[%s8 + $0xc] sm:$0xf]
      %v136 = vld [vmem:[%s10] sm:$0x1]
      %v138 = vlaneseq
      %v139 = vshrl.u32 %v138, 7
      %v140 = vsub.s32 0, %v139
      %v141 = vrot.slane %v136, %v140
      %v147 = vunpack.c.l.b16 %v132
      %v148 = vunpack.c.l.b16 %v133
      %v149 = vunpack.c.l.b16 %v134
      %v150 = vunpack.c.l.b16 %v135
      %v151 = vpack.c.b16 %v148, %v147
      %v152 = vpack.c.b16 %v150, %v149
      %155 = vmatprep.subr.bf16.mxu0 0
      %156 = vmatpush1.bf16.msra.mxu0 0
      %157 = vmatprep.subr.bf16.mxu0 0
      %158 = vmatpush1.bf16.msra.mxu0 0
      %159 = vmatprep.subr.bf16.mxu0 0
      %160 = vmatpush1.bf16.msra.mxu0 0
      %161 = vmatprep.subr.bf16.mxu0 0
      %162 = vmatpush1.bf16.msra.mxu0 0
      %163 = vmatprep.subr.bf16.mxu0 0
      %164 = vmatpush1.bf16.msra.mxu0 0
      %165 = vmatprep.subr.bf16.mxu0 0
      %166 = vmatpush1.bf16.msra.mxu0 0
      %167 = vmatprep.subr.bf16.mxu0 0
      %168 = vmatpush1.bf16.msra.mxu0 %v152
      %169 = vmatprep.subr.bf16.mxu0 0
      %170 = vmatpush1.bf16.msra.mxu0 %v151
      %171 = vmatprep.subr.bf16.mxu0 0
      %172 = vmatpush2.bf16.msra.mxu0 0
      %173 = vmatprep.subr.bf16.mxu0 0
      %174 = vmatpush2.bf16.msra.mxu0 0
      %175 = vmatprep.subr.bf16.mxu0 0
      %176 = vmatpush2.bf16.msra.mxu0 0
      %177 = vmatprep.subr.bf16.mxu0 0
      %178 = vmatpush2.bf16.msra.mxu0 0
      %179 = vmatprep.subr.bf16.mxu0 0
      %180 = vmatpush2.bf16.msra.mxu0 0
      %181 = vmatprep.subr.bf16.mxu0 0
      %182 = vmatpush2.bf16.msra.mxu0 0
      %183 = vmatprep.subr.bf16.mxu0 0
      %184 = vmatpush2.bf16.msra.mxu0 0
      %185 = vmatprep.subr.bf16.mxu0 0
      %186 = vmatpush2.bf16.msra.mxu0 0
      %187 = vmatprep.mubr.bf16.mxu0 0
      %188 = vmatmul.mubr.bf16.gmra.mxu0 %v87
      %v189 = vpop.f32.mrf.mxu0
      %v190 = vadd.f32 %v141, %v189
      %v191 = vpop.f32.mrf.mxu0
      %v192 = vpop.f32.mrf.mxu0
      %v193 = vpop.f32.mrf.mxu0
      %194 = vdwg.mxu0
      %v195 = vpack.c.bf16 %v190, %v190
      %vm196 = vcmask 519168
      %197 = vst.msk [vmem:[#allocation3] sm:$0xf] %vm196, %v195
      %vm198 = vcmask 785408
      %199 = vst.msk [vmem:[#allocation5] sm:$0xff] %vm198, 0.0
    $region69: #{tpu_custom_call.1} parent=1 // pred_fallthru
      _
    %v200 = vld [vmem:[%s4] sm:$0x1]
    %v201 = vld [vmem:[%s0] sm:$0xff]
    %v202 = vld [vmem:[%s0 + $0x8] sm:$0xff]
    %v203 = vld [vmem:[%s0 + $0x10] sm:$0xff]
    %v204 = vld [vmem:[%s0 + $0x18] sm:$0xff]
    %v205 = vld [vmem:[%s0 + $0x20] sm:$0xff]
    %v206 = vld [vmem:[%s0 + $0x28] sm:$0xff]
    %v207 = vld [vmem:[%s0 + $0x30] sm:$0xff]
    %v208 = vld [vmem:[%s0 + $0x38] sm:$0xff]
    %v209 = vld [vmem:[%s0 + $0x40] sm:$0xff]
    %v210 = vld [vmem:[%s0 + $0x48] sm:$0xff]
    %v211 = vld [vmem:[%s0 + $0x50] sm:$0xff]
    %v212 = vld [vmem:[%s0 + $0x58] sm:$0xff]
    %v213 = vld [vmem:[%s0 + $0x60] sm:$0xff]
    %v214 = vld [vmem:[%s0 + $0x68] sm:$0xff]
    %v215 = vld [vmem:[%s0 + $0x70] sm:$0xff]
    %v216 = vld [vmem:[%s0 + $0x78] sm:$0xff]
    %217 = vset.pattern.permute.xlu0 0
    %218 = vperm.xlu0 %217, %v201
    %v219 = vpop.permute.xlu0 %218
    %220 = vset.pattern.permute.xlu0 0
    %221 = vperm.xlu0 %220, %v202
    %v222 = vpop.permute.xlu0 %221
    %223 = vset.pattern.permute.xlu0 0
    %224 = vperm.xlu0 %223, %v203
    %v225 = vpop.permute.xlu0 %224
    %226 = vset.pattern.permute.xlu0 0
    %227 = vperm.xlu0 %226, %v204
    %v228 = vpop.permute.xlu0 %227
    %229 = vset.pattern.permute.xlu0 0
    %230 = vperm.xlu0 %229, %v205
    %v231 = vpop.permute.xlu0 %230
    %232 = vset.pattern.permute.xlu0 0
    %233 = vperm.xlu0 %232, %v206
    %v234 = vpop.permute.xlu0 %233
    %235 = vset.pattern.permute.xlu0 0
    %236 = vperm.xlu0 %235, %v207
    %v237 = vpop.permute.xlu0 %236
    %238 = vset.pattern.permute.xlu0 0
    %239 = vperm.xlu0 %238, %v208
    %v240 = vpop.permute.xlu0 %239
    %241 = vset.pattern.permute.xlu0 0
    %242 = vperm.xlu0 %241, %v209
    %v243 = vpop.permute.xlu0 %242
    %244 = vset.pattern.permute.xlu0 0
    %245 = vperm.xlu0 %244, %v210
    %v246 = vpop.permute.xlu0 %245
    %247 = vset.pattern.permute.xlu0 0
    %248 = vperm.xlu0 %247, %v211
    %v249 = vpop.permute.xlu0 %248
    %250 = vset.pattern.permute.xlu0 0
    %251 = vperm.xlu0 %250, %v212
    %v252 = vpop.permute.xlu0 %251
    %253 = vset.pattern.permute.xlu0 0
    %254 = vperm.xlu0 %253, %v213
    %v255 = vpop.permute.xlu0 %254
    %256 = vset.pattern.permute.xlu0 0
    %257 = vperm.xlu0 %256, %v214
    %v258 = vpop.permute.xlu0 %257
    %259 = vset.pattern.permute.xlu0 0
    %260 = vperm.xlu0 %259, %v215
    %v261 = vpop.permute.xlu0 %260
    %262 = vset.pattern.permute.xlu0 0
    %263 = vperm.xlu0 %262, %v216
    %v264 = vpop.permute.xlu0 %263
    %v265 = vlaneseq
    %v266 = vshrl.u32 %v265, 7
    %v267 = vsub.s32 0, %v266
    %v268 = vrot.slane %v200, %v267
    %vm269 = vcmp.eq.s32.totalorder %v219, %v268
    %vm270 = vcmp.eq.s32.totalorder %v222, %v268
    %vm271 = vcmp.eq.s32.totalorder %v225, %v268
    %vm272 = vcmp.eq.s32.totalorder %v228, %v268
    %vm273 = vcmp.eq.s32.totalorder %v231, %v268
    %vm274 = vcmp.eq.s32.totalorder %v234, %v268
    %vm275 = vcmp.eq.s32.totalorder %v237, %v268
    %vm276 = vcmp.eq.s32.totalorder %v240, %v268
    %vm277 = vcmp.eq.s32.totalorder %v243, %v268
    %vm278 = vcmp.eq.s32.totalorder %v246, %v268
    %vm279 = vcmp.eq.s32.totalorder %v249, %v268
    %vm280 = vcmp.eq.s32.totalorder %v252, %v268
    %vm281 = vcmp.eq.s32.totalorder %v255, %v268
    %vm282 = vcmp.eq.s32.totalorder %v258, %v268
    %vm283 = vcmp.eq.s32.totalorder %v261, %v268
    %vm284 = vcmp.eq.s32.totalorder %v264, %v268
    %v285 = vsel %vm269, 1, 0
    %v286 = vsel %vm270, 1, 0
    %v287 = vsel %vm271, 1, 0
    %v288 = vsel %vm272, 1, 0
    %v289 = vsel %vm273, 1, 0
    %v290 = vsel %vm274, 1, 0
    %v291 = vsel %vm275, 1, 0
    %v292 = vsel %vm276, 1, 0
    %v293 = vsel %vm277, 1, 0
    %v294 = vsel %vm278, 1, 0
    %v295 = vsel %vm279, 1, 0
    %v296 = vsel %vm280, 1, 0
    %v297 = vsel %vm281, 1, 0
    %v298 = vsel %vm282, 1, 0
    %v299 = vsel %vm283, 1, 0
    %v300 = vsel %vm284, 1, 0
    %v301 = vcvt.s32.f32 %v285
    %v302 = vcvt.s32.f32 %v286
    %v303 = vcvt.s32.f32 %v287
    %v304 = vcvt.s32.f32 %v288
    %v305 = vcvt.s32.f32 %v289
    %v306 = vcvt.s32.f32 %v290
    %v307 = vcvt.s32.f32 %v291
    %v308 = vcvt.s32.f32 %v292
    %v309 = vcvt.s32.f32 %v293
    %v310 = vcvt.s32.f32 %v294
    %v311 = vcvt.s32.f32 %v295
    %v312 = vcvt.s32.f32 %v296
    %v313 = vcvt.s32.f32 %v297
    %v314 = vcvt.s32.f32 %v298
    %v315 = vcvt.s32.f32 %v299
    %v316 = vcvt.s32.f32 %v300
    %v317 = vpack.c.bf16 %v302, %v301
    %v318 = vpack.c.bf16 %v304, %v303
    %v319 = vpack.c.bf16 %v306, %v305
    %v320 = vpack.c.bf16 %v308, %v307
    %v321 = vpack.c.bf16 %v310, %v309
    %v322 = vpack.c.bf16 %v312, %v311
    %v323 = vpack.c.bf16 %v314, %v313
    %v324 = vpack.c.bf16 %v316, %v315
    %v325 = vld [vmem:[%s1] sm:$0xff]
    %v326 = vld [vmem:[%s1 + $0x8] sm:$0xff]
    %v327 = vld [vmem:[%s1 + $0x10] sm:$0xff]
    %v328 = vld [vmem:[%s1 + $0x18] sm:$0xff]
    %v329 = vld [vmem:[%s1 + $0x20] sm:$0xff]
    %v330 = vld [vmem:[%s1 + $0x28] sm:$0xff]
    %v331 = vld [vmem:[%s1 + $0x30] sm:$0xff]
    %v332 = vld [vmem:[%s1 + $0x38] sm:$0xff]
    %v333 = vld [vmem:[%s1 + $0x40] sm:$0xff]
    %v334 = vld [vmem:[%s1 + $0x48] sm:$0xff]
    %v335 = vld [vmem:[%s1 + $0x50] sm:$0xff]
    %v336 = vld [vmem:[%s1 + $0x58] sm:$0xff]
    %v337 = vld [vmem:[%s1 + $0x60] sm:$0xff]
    %v338 = vld [vmem:[%s1 + $0x68] sm:$0xff]
    %v339 = vld [vmem:[%s1 + $0x70] sm:$0xff]
    %v340 = vld [vmem:[%s1 + $0x78] sm:$0xff]
    %341 = vset.pattern.permute.xlu0 0
    %342 = vperm.xlu0 %341, %v325
    %v343 = vpop.permute.xlu0 %342
    %344 = vset.pattern.permute.xlu0 0
    %345 = vperm.xlu0 %344, %v326
    %v346 = vpop.permute.xlu0 %345
    %347 = vset.pattern.permute.xlu0 0
    %348 = vperm.xlu0 %347, %v327
    %v349 = vpop.permute.xlu0 %348
    %350 = vset.pattern.permute.xlu0 0
    %351 = vperm.xlu0 %350, %v328
    %v352 = vpop.permute.xlu0 %351
    %353 = vset.pattern.permute.xlu0 0
    %354 = vperm.xlu0 %353, %v329
    %v355 = vpop.permute.xlu0 %354
    %356 = vset.pattern.permute.xlu0 0
    %357 = vperm.xlu0 %356, %v330
    %v358 = vpop.permute.xlu0 %357
    %359 = vset.pattern.permute.xlu0 0
    %360 = vperm.xlu0 %359, %v331
    %v361 = vpop.permute.xlu0 %360
    %362 = vset.pattern.permute.xlu0 0
    %363 = vperm.xlu0 %362, %v332
    %v364 = vpop.permute.xlu0 %363
    %365 = vset.pattern.permute.xlu0 0
    %366 = vperm.xlu0 %365, %v333
    %v367 = vpop.permute.xlu0 %366
    %368 = vset.pattern.permute.xlu0 0
    %369 = vperm.xlu0 %368, %v334
    %v370 = vpop.permute.xlu0 %369
    %371 = vset.pattern.permute.xlu0 0
    %372 = vperm.xlu0 %371, %v335
    %v373 = vpop.permute.xlu0 %372
    %374 = vset.pattern.permute.xlu0 0
    %375 = vperm.xlu0 %374, %v336
    %v376 = vpop.permute.xlu0 %375
    %377 = vset.pattern.permute.xlu0 0
    %378 = vperm.xlu0 %377, %v337
    %v379 = vpop.permute.xlu0 %378
    %380 = vset.pattern.permute.xlu0 0
    %381 = vperm.xlu0 %380, %v338
    %v382 = vpop.permute.xlu0 %381
    %383 = vset.pattern.permute.xlu0 0
    %384 = vperm.xlu0 %383, %v339
    %v385 = vpop.permute.xlu0 %384
    %386 = vset.pattern.permute.xlu0 0
    %387 = vperm.xlu0 %386, %v340
    %v388 = vpop.permute.xlu0 %387
    %vm389 = vcmp.eq.s32.totalorder %v343, %v268
    %vm390 = vcmp.eq.s32.totalorder %v346, %v268
    %vm391 = vcmp.eq.s32.totalorder %v349, %v268
    %vm392 = vcmp.eq.s32.totalorder %v352, %v268
    %vm393 = vcmp.eq.s32.totalorder %v355, %v268
    %vm394 = vcmp.eq.s32.totalorder %v358, %v268
    %vm395 = vcmp.eq.s32.totalorder %v361, %v268
    %vm396 = vcmp.eq.s32.totalorder %v364, %v268
    %vm397 = vcmp.eq.s32.totalorder %v367, %v268
    %vm398 = vcmp.eq.s32.totalorder %v370, %v268
    %vm399 = vcmp.eq.s32.totalorder %v373, %v268
    %vm400 = vcmp.eq.s32.totalorder %v376, %v268
    %vm401 = vcmp.eq.s32.totalorder %v379, %v268
    %vm402 = vcmp.eq.s32.totalorder %v382, %v268
    %vm403 = vcmp.eq.s32.totalorder %v385, %v268
    %vm404 = vcmp.eq.s32.totalorder %v388, %v268
    %v405 = vsel %vm389, 1, 0
    %v406 = vsel %vm390, 1, 0
    %v407 = vsel %vm391, 1, 0
    %v408 = vsel %vm392, 1, 0
    %v409 = vsel %vm393, 1, 0
    %v410 = vsel %vm394, 1, 0
    %v411 = vsel %vm395, 1, 0
    %v412 = vsel %vm396, 1, 0
    %v413 = vsel %vm397, 1, 0
    %v414 = vsel %vm398, 1, 0
    %v415 = vsel %vm399, 1, 0
    %v416 = vsel %vm400, 1, 0
    %v417 = vsel %vm401, 1, 0
    %v418 = vsel %vm402, 1, 0
    %v419 = vsel %vm403, 1, 0
    %v420 = vsel %vm404, 1, 0
    %v421 = vcvt.s32.f32 %v405
    %v422 = vcvt.s32.f32 %v406
    %v423 = vcvt.s32.f32 %v407
    %v424 = vcvt.s32.f32 %v408
    %v425 = vcvt.s32.f32 %v409
    %v426 = vcvt.s32.f32 %v410
    %v427 = vcvt.s32.f32 %v411
    %v428 = vcvt.s32.f32 %v412
    %v429 = vcvt.s32.f32 %v413
    %v430 = vcvt.s32.f32 %v414
    %v431 = vcvt.s32.f32 %v415
    %v432 = vcvt.s32.f32 %v416
    %v433 = vcvt.s32.f32 %v417
    %v434 = vcvt.s32.f32 %v418
    %v435 = vcvt.s32.f32 %v419
    %v436 = vcvt.s32.f32 %v420
    %v437 = vpack.c.bf16 %v422, %v421
    %v438 = vpack.c.bf16 %v424, %v423
    %v439 = vpack.c.bf16 %v426, %v425
    %v440 = vpack.c.bf16 %v428, %v427
    %v441 = vpack.c.bf16 %v430, %v429
    %v442 = vpack.c.bf16 %v432, %v431
    %v443 = vpack.c.bf16 %v434, %v433
    %v444 = vpack.c.bf16 %v436, %v435
    %v445 = vld [vmem:[%s5] sm:$0xff]
    %v446 = vld [vmem:[%s2] sm:$0x1]
    %447 = vset.pattern.permute.xlu0 0
    %448 = vperm.xlu0 %447, %v445
    %v449 = vpop.permute.xlu0 %448
    %v450 = vlaneseq
    %v451 = vshrl.u32 %v450, 7
    %v452 = vsub.s32 0, %v451
    %v453 = vrot.slane %v446, %v452
    %vm454 = vcmp.eq.s32.totalorder %v449, %v453
    %v455 = vsel %vm454, 1, 0
    %v456 = vcvt.s32.f32 %v455
    %v457 = vpack.c.bf16 %v456, %v456
    %v458 = vld [vmem:[#allocation3] sm:$0xf]
    %vm459 = vcmask 64512
    %v461 = vsel %vm459, %v317, 0
    %v464 = vsel %vm459, %v318, 0
    %v467 = vsel %vm459, %v319, 0
    %v470 = vsel %vm459, %v320, 0
    %v473 = vsel %vm459, %v321, 0
    %v476 = vsel %vm459, %v322, 0
    %v479 = vsel %vm459, %v323, 0
    %v482 = vsel %vm459, %v324, 0
    %vm484 = vcmask 1043456
    %v486 = vsel %vm484, %v458, 0
    %488 = vmatprep.subr.bf16.mxu0 0
    %489 = vmatpush1.bf16.msra.mxu0 0
    %490 = vmatprep.subr.bf16.mxu0 0
    %491 = vmatpush1.bf16.msra.mxu0 0
    %492 = vmatprep.subr.bf16.mxu0 0
    %493 = vmatpush1.bf16.msra.mxu0 0
    %494 = vmatprep.subr.bf16.mxu0 0
    %495 = vmatpush1.bf16.msra.mxu0 0
    %496 = vmatprep.subr.bf16.mxu0 0
    %497 = vmatpush1.bf16.msra.mxu0 0
    %498 = vmatprep.subr.bf16.mxu0 0
    %499 = vmatpush1.bf16.msra.mxu0 0
    %500 = vmatprep.subr.bf16.mxu0 0
    %501 = vmatpush1.bf16.msra.mxu0 0
    %502 = vmatprep.subr.bf16.mxu0 0
    %503 = vmatpush1.bf16.msra.mxu0 %v486
    %504 = vmatprep.subr.bf16.mxu0 0
    %505 = vmatpush2.bf16.msra.mxu0 0
    %506 = vmatprep.subr.bf16.mxu0 0
    %507 = vmatpush2.bf16.msra.mxu0 0
    %508 = vmatprep.subr.bf16.mxu0 0
    %509 = vmatpush2.bf16.msra.mxu0 0
    %510 = vmatprep.subr.bf16.mxu0 0
    %511 = vmatpush2.bf16.msra.mxu0 0
    %512 = vmatprep.subr.bf16.mxu0 0
    %513 = vmatpush2.bf16.msra.mxu0 0
    %514 = vmatprep.subr.bf16.mxu0 0
    %515 = vmatpush2.bf16.msra.mxu0 0
    %516 = vmatprep.subr.bf16.mxu0 0
    %517 = vmatpush2.bf16.msra.mxu0 0
    %518 = vmatprep.subr.bf16.mxu0 0
    %519 = vmatpush2.bf16.msra.mxu0 0
    %520 = vmatprep.mubr.bf16.mxu0 0
    %521 = vmatmul.mubr.bf16.gmra.mxu0 %v461
    %v522 = vpop.f32.mrf.mxu0
    %v523 = vadd.f32 0.0, %v522
    %v524 = vpop.f32.mrf.mxu0
    %v525 = vpop.f32.mrf.mxu0
    %v526 = vadd.f32 0.0, %v525
    %v527 = vpop.f32.mrf.mxu0
    %528 = vmatprep.mubr.bf16.mxu0 0
    %529 = vmatmul.mubr.bf16.gmra.mxu0 %v464
    %v530 = vpop.f32.mrf.mxu0
    %v531 = vadd.f32 0.0, %v530
    %v532 = vpop.f32.mrf.mxu0
    %v533 = vpop.f32.mrf.mxu0
    %v534 = vadd.f32 0.0, %v533
    %v535 = vpop.f32.mrf.mxu0
    %536 = vmatprep.mubr.bf16.mxu0 0
    %537 = vmatmul.mubr.bf16.gmra.mxu0 %v467
    %v538 = vpop.f32.mrf.mxu0
    %v539 = vadd.f32 0.0, %v538
    %v540 = vpop.f32.mrf.mxu0
    %v541 = vpop.f32.mrf.mxu0
    %v542 = vadd.f32 0.0, %v541
    %v543 = vpop.f32.mrf.mxu0
    %544 = vmatprep.mubr.bf16.mxu0 0
    %545 = vmatmul.mubr.bf16.gmra.mxu0 %v470
    %v546 = vpop.f32.mrf.mxu0
    %v547 = vadd.f32 0.0, %v546
    %v548 = vpop.f32.mrf.mxu0
    %v549 = vpop.f32.mrf.mxu0
    %v550 = vadd.f32 0.0, %v549
    %v551 = vpop.f32.mrf.mxu0
    %552 = vmatprep.mubr.bf16.mxu0 0
    %553 = vmatmul.mubr.bf16.gmra.mxu0 %v473
    %v554 = vpop.f32.mrf.mxu0
    %v555 = vadd.f32 0.0, %v554
    %v556 = vpop.f32.mrf.mxu0
    %v557 = vpop.f32.mrf.mxu0
    %v558 = vadd.f32 0.0, %v557
    %v559 = vpop.f32.mrf.mxu0
    %560 = vmatprep.mubr.bf16.mxu0 0
    %561 = vmatmul.mubr.bf16.gmra.mxu0 %v476
    %v562 = vpop.f32.mrf.mxu0
    %v563 = vadd.f32 0.0, %v562
    %v564 = vpop.f32.mrf.mxu0
    %v565 = vpop.f32.mrf.mxu0
    %v566 = vadd.f32 0.0, %v565
    %v567 = vpop.f32.mrf.mxu0
    %568 = vmatprep.mubr.bf16.mxu0 0
    %569 = vmatmul.mubr.bf16.gmra.mxu0 %v479
    %v570 = vpop.f32.mrf.mxu0
    %v571 = vadd.f32 0.0, %v570
    %v572 = vpop.f32.mrf.mxu0
    %v573 = vpop.f32.mrf.mxu0
    %v574 = vadd.f32 0.0, %v573
    %v575 = vpop.f32.mrf.mxu0
    %576 = vmatprep.mubr.bf16.mxu0 0
    %577 = vmatmul.mubr.bf16.gmra.mxu0 %v482
    %v578 = vpop.f32.mrf.mxu0
    %v579 = vadd.f32 0.0, %v578
    %v580 = vpop.f32.mrf.mxu0
    %v581 = vpop.f32.mrf.mxu0
    %v582 = vadd.f32 0.0, %v581
    %v583 = vpop.f32.mrf.mxu0
    %584 = vdwg.mxu0
    %v585 = vld [vmem:[#allocation2] sm:$0xf]
    %v587 = vsel %vm459, %v437, 0
    %v590 = vsel %vm459, %v438, 0
    %v593 = vsel %vm459, %v439, 0
    %v596 = vsel %vm459, %v440, 0
    %v599 = vsel %vm459, %v441, 0
    %v602 = vsel %vm459, %v442, 0
    %v605 = vsel %vm459, %v443, 0
    %v608 = vsel %vm459, %v444, 0
    %v611 = vsel %vm484, %v585, 0
    %613 = vmatprep.subr.bf16.mxu0 0
    %614 = vmatpush1.bf16.msra.mxu0 0
    %615 = vmatprep.subr.bf16.mxu0 0
    %616 = vmatpush1.bf16.msra.mxu0 0
    %617 = vmatprep.subr.bf16.mxu0 0
    %618 = vmatpush1.bf16.msra.mxu0 0
    %619 = vmatprep.subr.bf16.mxu0 0
    %620 = vmatpush1.bf16.msra.mxu0 0
    %621 = vmatprep.subr.bf16.mxu0 0
    %622 = vmatpush1.bf16.msra.mxu0 0
    %623 = vmatprep.subr.bf16.mxu0 0
    %624 = vmatpush1.bf16.msra.mxu0 0
    %625 = vmatprep.subr.bf16.mxu0 0
    %626 = vmatpush1.bf16.msra.mxu0 0
    %627 = vmatprep.subr.bf16.mxu0 0
    %628 = vmatpush1.bf16.msra.mxu0 %v611
    %629 = vmatprep.subr.bf16.mxu0 0
    %630 = vmatpush2.bf16.msra.mxu0 0
    %631 = vmatprep.subr.bf16.mxu0 0
    %632 = vmatpush2.bf16.msra.mxu0 0
    %633 = vmatprep.subr.bf16.mxu0 0
    %634 = vmatpush2.bf16.msra.mxu0 0
    %635 = vmatprep.subr.bf16.mxu0 0
    %636 = vmatpush2.bf16.msra.mxu0 0
    %637 = vmatprep.subr.bf16.mxu0 0
    %638 = vmatpush2.bf16.msra.mxu0 0
    %639 = vmatprep.subr.bf16.mxu0 0
    %640 = vmatpush2.bf16.msra.mxu0 0
    %641 = vmatprep.subr.bf16.mxu0 0
    %642 = vmatpush2.bf16.msra.mxu0 0
    %643 = vmatprep.subr.bf16.mxu0 0
    %644 = vmatpush2.bf16.msra.mxu0 0
    %645 = vmatprep.mubr.bf16.mxu0 0
    %646 = vmatmul.mubr.bf16.gmra.mxu0 %v587
    %v647 = vpop.f32.mrf.mxu0
    %v648 = vadd.f32 0.0, %v647
    %v649 = vpop.f32.mrf.mxu0
    %v650 = vpop.f32.mrf.mxu0
    %v651 = vadd.f32 0.0, %v650
    %v652 = vpop.f32.mrf.mxu0
    %653 = vmatprep.mubr.bf16.mxu0 0
    %654 = vmatmul.mubr.bf16.gmra.mxu0 %v590
    %v655 = vpop.f32.mrf.mxu0
    %v656 = vadd.f32 0.0, %v655
    %v657 = vpop.f32.mrf.mxu0
    %v658 = vpop.f32.mrf.mxu0
    %v659 = vadd.f32 0.0, %v658
    %v660 = vpop.f32.mrf.mxu0
    %661 = vmatprep.mubr.bf16.mxu0 0
    %662 = vmatmul.mubr.bf16.gmra.mxu0 %v593
    %v663 = vpop.f32.mrf.mxu0
    %v664 = vadd.f32 0.0, %v663
    %v665 = vpop.f32.mrf.mxu0
    %v666 = vpop.f32.mrf.mxu0
    %v667 = vadd.f32 0.0, %v666
    %v668 = vpop.f32.mrf.mxu0
    %669 = vmatprep.mubr.bf16.mxu0 0
    %670 = vmatmul.mubr.bf16.gmra.mxu0 %v596
    %v671 = vpop.f32.mrf.mxu0
    %v672 = vadd.f32 0.0, %v671
    %v673 = vpop.f32.mrf.mxu0
    %v674 = vpop.f32.mrf.mxu0
    %v675 = vadd.f32 0.0, %v674
    %v676 = vpop.f32.mrf.mxu0
    %677 = vmatprep.mubr.bf16.mxu0 0
    %678 = vmatmul.mubr.bf16.gmra.mxu0 %v599
    %v679 = vpop.f32.mrf.mxu0
    %v680 = vadd.f32 0.0, %v679
    %v681 = vpop.f32.mrf.mxu0
    %v682 = vpop.f32.mrf.mxu0
    %v683 = vadd.f32 0.0, %v682
    %v684 = vpop.f32.mrf.mxu0
    %685 = vmatprep.mubr.bf16.mxu0 0
    %686 = vmatmul.mubr.bf16.gmra.mxu0 %v602
    %v687 = vpop.f32.mrf.mxu0
    %v688 = vadd.f32 0.0, %v687
    %v689 = vpop.f32.mrf.mxu0
    %v690 = vpop.f32.mrf.mxu0
    %v691 = vadd.f32 0.0, %v690
    %v692 = vpop.f32.mrf.mxu0
    %693 = vmatprep.mubr.bf16.mxu0 0
    %694 = vmatmul.mubr.bf16.gmra.mxu0 %v605
    %v695 = vpop.f32.mrf.mxu0
    %v696 = vadd.f32 0.0, %v695
    %v697 = vpop.f32.mrf.mxu0
    %v698 = vpop.f32.mrf.mxu0
    %v699 = vadd.f32 0.0, %v698
    %v700 = vpop.f32.mrf.mxu0
    %701 = vmatprep.mubr.bf16.mxu0 0
    %702 = vmatmul.mubr.bf16.gmra.mxu0 %v608
    %v703 = vpop.f32.mrf.mxu0
    %v704 = vadd.f32 0.0, %v703
    %v705 = vpop.f32.mrf.mxu0
    %v706 = vpop.f32.mrf.mxu0
    %v707 = vadd.f32 0.0, %v706
    %v708 = vpop.f32.mrf.mxu0
    %709 = vdwg.mxu0
    %v710 = vld [vmem:[%s3] sm:$0xf]
    %v711 = vld [vmem:[%s3 + $0x4] sm:$0xf]
    %v712 = vld [vmem:[%s3 + $0x8] sm:$0xf]
    %v713 = vld [vmem:[%s3 + $0xc] sm:$0xf]
    %v714 = vld [vmem:[%s3 + $0x10] sm:$0xf]
    %v715 = vld [vmem:[%s3 + $0x14] sm:$0xf]
    %v716 = vld [vmem:[%s3 + $0x18] sm:$0xf]
    %v717 = vld [vmem:[%s3 + $0x1c] sm:$0xf]
    %v718 = vld [vmem:[%s3 + $0x20] sm:$0xf]
    %v719 = vld [vmem:[%s3 + $0x24] sm:$0xf]
    %v720 = vld [vmem:[%s3 + $0x28] sm:$0xf]
    %v721 = vld [vmem:[%s3 + $0x2c] sm:$0xf]
    %v722 = vld [vmem:[%s3 + $0x30] sm:$0xf]
    %v723 = vld [vmem:[%s3 + $0x34] sm:$0xf]
    %v724 = vld [vmem:[%s3 + $0x38] sm:$0xf]
    %v725 = vld [vmem:[%s3 + $0x3c] sm:$0xf]
    %v726 = vld [vmem:[%s11] sm:$0xf]
    %v727 = vld [vmem:[%s11 + $0x4] sm:$0xf]
    %v728 = vld [vmem:[%s11 + $0x8] sm:$0xf]
    %v729 = vld [vmem:[%s11 + $0xc] sm:$0xf]
    %v730 = vld [vmem:[%s12] sm:$0x1]
    %v732 = vlaneseq
    %v733 = vshrl.u32 %v732, 7
    %v734 = vsub.s32 0, %v733
    %v735 = vrot.slane %v730, %v734
    %v753 = vunpack.c.l.b16 %v710
    %v754 = vunpack.c.l.b16 %v711
    %v755 = vunpack.c.l.b16 %v712
    %v756 = vunpack.c.l.b16 %v713
    %v757 = vunpack.c.l.b16 %v714
    %v758 = vunpack.c.l.b16 %v715
    %v759 = vunpack.c.l.b16 %v716
    %v760 = vunpack.c.l.b16 %v717
    %v761 = vunpack.c.l.b16 %v718
    %v762 = vunpack.c.l.b16 %v719
    %v763 = vunpack.c.l.b16 %v720
    %v764 = vunpack.c.l.b16 %v721
    %v765 = vunpack.c.l.b16 %v722
    %v766 = vunpack.c.l.b16 %v723
    %v767 = vunpack.c.l.b16 %v724
    %v768 = vunpack.c.l.b16 %v725
    %v769 = vpack.c.b16 %v754, %v753
    %v770 = vpack.c.b16 %v756, %v755
    %v771 = vpack.c.b16 %v758, %v757
    %v772 = vpack.c.b16 %v760, %v759
    %v773 = vpack.c.b16 %v762, %v761
    %v774 = vpack.c.b16 %v764, %v763
    %v775 = vpack.c.b16 %v766, %v765
    %v776 = vpack.c.b16 %v768, %v767
    %v781 = vunpack.c.l.b16 %v726
    %v782 = vunpack.c.l.b16 %v727
    %v783 = vunpack.c.l.b16 %v728
    %v784 = vunpack.c.l.b16 %v729
    %v785 = vpack.c.b16 %v782, %v781
    %v786 = vpack.c.b16 %v784, %v783
    %vm789 = vcmask 261120
    %v791 = vsel %vm789, %v769, 0
    %v794 = vsel %vm789, %v770, 0
    %v797 = vsel %vm789, %v771, 0
    %v800 = vsel %vm789, %v772, 0
    %v803 = vsel %vm789, %v773, 0
    %v806 = vsel %vm789, %v774, 0
    %v809 = vsel %vm789, %v775, 0
    %v812 = vsel %vm789, %v776, 0
    %814 = vmatprep.subr.bf16.mxu0 0
    %815 = vmatpush1.bf16.msra.mxu0 0
    %816 = vmatprep.subr.bf16.mxu0 0
    %817 = vmatpush1.bf16.msra.mxu0 0
    %818 = vmatprep.subr.bf16.mxu0 0
    %819 = vmatpush1.bf16.msra.mxu0 0
    %820 = vmatprep.subr.bf16.mxu0 0
    %821 = vmatpush1.bf16.msra.mxu0 0
    %822 = vmatprep.subr.bf16.mxu0 0
    %823 = vmatpush1.bf16.msra.mxu0 0
    %824 = vmatprep.subr.bf16.mxu0 0
    %825 = vmatpush1.bf16.msra.mxu0 0
    %826 = vmatprep.subr.bf16.mxu0 0
    %827 = vmatpush1.bf16.msra.mxu0 %v786
    %828 = vmatprep.subr.bf16.mxu0 0
    %829 = vmatpush1.bf16.msra.mxu0 %v785
    %830 = vmatprep.subr.bf16.mxu0 0
    %831 = vmatpush2.bf16.msra.mxu0 0
    %832 = vmatprep.subr.bf16.mxu0 0
    %833 = vmatpush2.bf16.msra.mxu0 0
    %834 = vmatprep.subr.bf16.mxu0 0
    %835 = vmatpush2.bf16.msra.mxu0 0
    %836 = vmatprep.subr.bf16.mxu0 0
    %837 = vmatpush2.bf16.msra.mxu0 0
    %838 = vmatprep.subr.bf16.mxu0 0
    %839 = vmatpush2.bf16.msra.mxu0 0
    %840 = vmatprep.subr.bf16.mxu0 0
    %841 = vmatpush2.bf16.msra.mxu0 0
    %842 = vmatprep.subr.bf16.mxu0 0
    %843 = vmatpush2.bf16.msra.mxu0 0
    %844 = vmatprep.subr.bf16.mxu0 0
    %845 = vmatpush2.bf16.msra.mxu0 0
    %846 = vmatprep.mubr.bf16.mxu0 0
    %847 = vmatmul.mubr.bf16.gmra.mxu0 %v791
    %v848 = vpop.f32.mrf.mxu0
    %v849 = vadd.f32 %v735, %v848
    %v850 = vpop.f32.mrf.mxu0
    %v851 = vpop.f32.mrf.mxu0
    %v852 = vadd.f32 %v735, %v851
    %v853 = vpop.f32.mrf.mxu0
    %854 = vmatprep.mubr.bf16.mxu0 0
    %855 = vmatmul.mubr.bf16.gmra.mxu0 %v794
    %v856 = vpop.f32.mrf.mxu0
    %v857 = vadd.f32 %v735, %v856
    %v858 = vpop.f32.mrf.mxu0
    %v859 = vpop.f32.mrf.mxu0
    %v860 = vadd.f32 %v735, %v859
    %v861 = vpop.f32.mrf.mxu0
    %862 = vmatprep.mubr.bf16.mxu0 0
    %863 = vmatmul.mubr.bf16.gmra.mxu0 %v797
    %v864 = vpop.f32.mrf.mxu0
    %v865 = vadd.f32 %v735, %v864
    %v866 = vpop.f32.mrf.mxu0
    %v867 = vpop.f32.mrf.mxu0
    %v868 = vadd.f32 %v735, %v867
    %v869 = vpop.f32.mrf.mxu0
    %870 = vmatprep.mubr.bf16.mxu0 0
    %871 = vmatmul.mubr.bf16.gmra.mxu0 %v800
    %v872 = vpop.f32.mrf.mxu0
    %v873 = vadd.f32 %v735, %v872
    %v874 = vpop.f32.mrf.mxu0
    %v875 = vpop.f32.mrf.mxu0
    %v876 = vadd.f32 %v735, %v875
    %v877 = vpop.f32.mrf.mxu0
    %878 = vmatprep.mubr.bf16.mxu0 0
    %879 = vmatmul.mubr.bf16.gmra.mxu0 %v803
    %v880 = vpop.f32.mrf.mxu0
    %v881 = vadd.f32 %v735, %v880
    %v882 = vpop.f32.mrf.mxu0
    %v883 = vpop.f32.mrf.mxu0
    %v884 = vadd.f32 %v735, %v883
    %v885 = vpop.f32.mrf.mxu0
    %886 = vmatprep.mubr.bf16.mxu0 0
    %887 = vmatmul.mubr.bf16.gmra.mxu0 %v806
    %v888 = vpop.f32.mrf.mxu0
    %v889 = vadd.f32 %v735, %v888
    %v890 = vpop.f32.mrf.mxu0
    %v891 = vpop.f32.mrf.mxu0
    %v892 = vadd.f32 %v735, %v891
    %v893 = vpop.f32.mrf.mxu0
    %894 = vmatprep.mubr.bf16.mxu0 0
    %895 = vmatmul.mubr.bf16.gmra.mxu0 %v809
    %v896 = vpop.f32.mrf.mxu0
    %v897 = vadd.f32 %v735, %v896
    %v898 = vpop.f32.mrf.mxu0
    %v899 = vpop.f32.mrf.mxu0
    %v900 = vadd.f32 %v735, %v899
    %v901 = vpop.f32.mrf.mxu0
    %902 = vmatprep.mubr.bf16.mxu0 0
    %903 = vmatmul.mubr.bf16.gmra.mxu0 %v812
    %v904 = vpop.f32.mrf.mxu0
    %v905 = vadd.f32 %v735, %v904
    %v906 = vpop.f32.mrf.mxu0
    %v907 = vpop.f32.mrf.mxu0
    %v908 = vadd.f32 %v735, %v907
    %v909 = vpop.f32.mrf.mxu0
    %910 = vdwg.mxu0
    %v911 = vadd.f32 %v523, %v648
    %v912 = vadd.f32 %v526, %v651
    %v913 = vadd.f32 %v531, %v656
    %v914 = vadd.f32 %v534, %v659
    %v915 = vadd.f32 %v539, %v664
    %v916 = vadd.f32 %v542, %v667
    %v917 = vadd.f32 %v547, %v672
    %v918 = vadd.f32 %v550, %v675
    %v919 = vadd.f32 %v555, %v680
    %v920 = vadd.f32 %v558, %v683
    %v921 = vadd.f32 %v563, %v688
    %v922 = vadd.f32 %v566, %v691
    %v923 = vadd.f32 %v571, %v696
    %v924 = vadd.f32 %v574, %v699
    %v925 = vadd.f32 %v579, %v704
    %v926 = vadd.f32 %v582, %v707
    %v927 = vmul.f32 %v911, %v849
    %v928 = vmul.f32 %v912, %v852
    %v929 = vmul.f32 %v913, %v857
    %v930 = vmul.f32 %v914, %v860
    %v931 = vmul.f32 %v915, %v865
    %v932 = vmul.f32 %v916, %v868
    %v933 = vmul.f32 %v917, %v873
    %v934 = vmul.f32 %v918, %v876
    %v935 = vmul.f32 %v919, %v881
    %v936 = vmul.f32 %v920, %v884
    %v937 = vmul.f32 %v921, %v889
    %v938 = vmul.f32 %v922, %v892
    %v939 = vmul.f32 %v923, %v897
    %v940 = vmul.f32 %v924, %v900
    %v941 = vmul.f32 %v925, %v905
    %v942 = vmul.f32 %v926, %v908
    %v943 = vmax.f32 %v927, 0.0
    %v944 = vmax.f32 %v928, 0.0
    %v945 = vmax.f32 %v929, 0.0
    %v946 = vmax.f32 %v930, 0.0
    %v947 = vmax.f32 %v931, 0.0
    %v948 = vmax.f32 %v932, 0.0
    %v949 = vmax.f32 %v933, 0.0
    %v950 = vmax.f32 %v934, 0.0
    %v951 = vmax.f32 %v935, 0.0
    %v952 = vmax.f32 %v936, 0.0
    %v953 = vmax.f32 %v937, 0.0
    %v954 = vmax.f32 %v938, 0.0
    %v955 = vmax.f32 %v939, 0.0
    %v956 = vmax.f32 %v940, 0.0
    %v957 = vmax.f32 %v941, 0.0
    %v958 = vmax.f32 %v942, 0.0
    %v959 = vrsqrt.pop %v943
    %v960 = vmul.f32 %v943, %v959
    %vm961 = vcmp.eq.f32.partialorder %v943, inf
    %v962 = vsel %vm961, %v943, %v960
    %vm963 = vcmp.eq.f32.partialorder %v943, 0.0
    %v964 = vand.u32 %v943, 2147483648
    %v965 = vsel %vm963, %v964, %v962
    %v966 = vrsqrt.pop %v944
    %v967 = vmul.f32 %v944, %v966
    %vm968 = vcmp.eq.f32.partialorder %v944, inf
    %v969 = vsel %vm968, %v944, %v967
    %vm970 = vcmp.eq.f32.partialorder %v944, 0.0
    %v971 = vand.u32 %v944, 2147483648
    %v972 = vsel %vm970, %v971, %v969
    %v973 = vrsqrt.pop %v945
    %v974 = vmul.f32 %v945, %v973
    %vm975 = vcmp.eq.f32.partialorder %v945, inf
    %v976 = vsel %vm975, %v945, %v974
    %vm977 = vcmp.eq.f32.partialorder %v945, 0.0
    %v978 = vand.u32 %v945, 2147483648
    %v979 = vsel %vm977, %v978, %v976
    %v980 = vrsqrt.pop %v946
    %v981 = vmul.f32 %v946, %v980
    %vm982 = vcmp.eq.f32.partialorder %v946, inf
    %v983 = vsel %vm982, %v946, %v981
    %vm984 = vcmp.eq.f32.partialorder %v946, 0.0
    %v985 = vand.u32 %v946, 2147483648
    %v986 = vsel %vm984, %v985, %v983
    %v987 = vrsqrt.pop %v947
    %v988 = vmul.f32 %v947, %v987
    %vm989 = vcmp.eq.f32.partialorder %v947, inf
    %v990 = vsel %vm989, %v947, %v988
    %vm991 = vcmp.eq.f32.partialorder %v947, 0.0
    %v992 = vand.u32 %v947, 2147483648
    %v993 = vsel %vm991, %v992, %v990
    %v994 = vrsqrt.pop %v948
    %v995 = vmul.f32 %v948, %v994
    %vm996 = vcmp.eq.f32.partialorder %v948, inf
    %v997 = vsel %vm996, %v948, %v995
    %vm998 = vcmp.eq.f32.partialorder %v948, 0.0
    %v999 = vand.u32 %v948, 2147483648
    %v1000 = vsel %vm998, %v999, %v997
    %v1001 = vrsqrt.pop %v949
    %v1002 = vmul.f32 %v949, %v1001
    %vm1003 = vcmp.eq.f32.partialorder %v949, inf
    %v1004 = vsel %vm1003, %v949, %v1002
    %vm1005 = vcmp.eq.f32.partialorder %v949, 0.0
    %v1006 = vand.u32 %v949, 2147483648
    %v1007 = vsel %vm1005, %v1006, %v1004
    %v1008 = vrsqrt.pop %v950
    %v1009 = vmul.f32 %v950, %v1008
    %vm1010 = vcmp.eq.f32.partialorder %v950, inf
    %v1011 = vsel %vm1010, %v950, %v1009
    %vm1012 = vcmp.eq.f32.partialorder %v950, 0.0
    %v1013 = vand.u32 %v950, 2147483648
    %v1014 = vsel %vm1012, %v1013, %v1011
    %v1015 = vrsqrt.pop %v951
    %v1016 = vmul.f32 %v951, %v1015
    %vm1017 = vcmp.eq.f32.partialorder %v951, inf
    %v1018 = vsel %vm1017, %v951, %v1016
    %vm1019 = vcmp.eq.f32.partialorder %v951, 0.0
    %v1020 = vand.u32 %v951, 2147483648
    %v1021 = vsel %vm1019, %v1020, %v1018
    %v1022 = vrsqrt.pop %v952
    %v1023 = vmul.f32 %v952, %v1022
    %vm1024 = vcmp.eq.f32.partialorder %v952, inf
    %v1025 = vsel %vm1024, %v952, %v1023
    %vm1026 = vcmp.eq.f32.partialorder %v952, 0.0
    %v1027 = vand.u32 %v952, 2147483648
    %v1028 = vsel %vm1026, %v1027, %v1025
    %v1029 = vrsqrt.pop %v953
    %v1030 = vmul.f32 %v953, %v1029
    %vm1031 = vcmp.eq.f32.partialorder %v953, inf
    %v1032 = vsel %vm1031, %v953, %v1030
    %vm1033 = vcmp.eq.f32.partialorder %v953, 0.0
    %v1034 = vand.u32 %v953, 2147483648
    %v1035 = vsel %vm1033, %v1034, %v1032
    %v1036 = vrsqrt.pop %v954
    %v1037 = vmul.f32 %v954, %v1036
    %vm1038 = vcmp.eq.f32.partialorder %v954, inf
    %v1039 = vsel %vm1038, %v954, %v1037
    %vm1040 = vcmp.eq.f32.partialorder %v954, 0.0
    %v1041 = vand.u32 %v954, 2147483648
    %v1042 = vsel %vm1040, %v1041, %v1039
    %v1043 = vrsqrt.pop %v955
    %v1044 = vmul.f32 %v955, %v1043
    %vm1045 = vcmp.eq.f32.partialorder %v955, inf
    %v1046 = vsel %vm1045, %v955, %v1044
    %vm1047 = vcmp.eq.f32.partialorder %v955, 0.0
    %v1048 = vand.u32 %v955, 2147483648
    %v1049 = vsel %vm1047, %v1048, %v1046
    %v1050 = vrsqrt.pop %v956
    %v1051 = vmul.f32 %v956, %v1050
    %vm1052 = vcmp.eq.f32.partialorder %v956, inf
    %v1053 = vsel %vm1052, %v956, %v1051
    %vm1054 = vcmp.eq.f32.partialorder %v956, 0.0
    %v1055 = vand.u32 %v956, 2147483648
    %v1056 = vsel %vm1054, %v1055, %v1053
    %v1057 = vrsqrt.pop %v957
    %v1058 = vmul.f32 %v957, %v1057
    %vm1059 = vcmp.eq.f32.partialorder %v957, inf
    %v1060 = vsel %vm1059, %v957, %v1058
    %vm1061 = vcmp.eq.f32.partialorder %v957, 0.0
    %v1062 = vand.u32 %v957, 2147483648
    %v1063 = vsel %vm1061, %v1062, %v1060
    %v1064 = vrsqrt.pop %v958
    %v1065 = vmul.f32 %v958, %v1064
    %vm1066 = vcmp.eq.f32.partialorder %v958, inf
    %v1067 = vsel %vm1066, %v958, %v1065
    %vm1068 = vcmp.eq.f32.partialorder %v958, 0.0
    %v1069 = vand.u32 %v958, 2147483648
    %v1070 = vsel %vm1068, %v1069, %v1067
    %v1071 = vsub.f32 0.0, %v927
    %v1072 = vsub.f32 0.0, %v928
    %v1073 = vsub.f32 0.0, %v929
    %v1074 = vsub.f32 0.0, %v930
    %v1075 = vsub.f32 0.0, %v931
    %v1076 = vsub.f32 0.0, %v932
    %v1077 = vsub.f32 0.0, %v933
    %v1078 = vsub.f32 0.0, %v934
    %v1079 = vsub.f32 0.0, %v935
    %v1080 = vsub.f32 0.0, %v936
    %v1081 = vsub.f32 0.0, %v937
    %v1082 = vsub.f32 0.0, %v938
    %v1083 = vsub.f32 0.0, %v939
    %v1084 = vsub.f32 0.0, %v940
    %v1085 = vsub.f32 0.0, %v941
    %v1086 = vsub.f32 0.0, %v942
    %v1087 = vmax.f32 %v1071, 0.0
    %v1088 = vmax.f32 %v1072, 0.0
    %v1089 = vmax.f32 %v1073, 0.0
    %v1090 = vmax.f32 %v1074, 0.0
    %v1091 = vmax.f32 %v1075, 0.0
    %v1092 = vmax.f32 %v1076, 0.0
    %v1093 = vmax.f32 %v1077, 0.0
    %v1094 = vmax.f32 %v1078, 0.0
    %v1095 = vmax.f32 %v1079, 0.0
    %v1096 = vmax.f32 %v1080, 0.0
    %v1097 = vmax.f32 %v1081, 0.0
    %v1098 = vmax.f32 %v1082, 0.0
    %v1099 = vmax.f32 %v1083, 0.0
    %v1100 = vmax.f32 %v1084, 0.0
    %v1101 = vmax.f32 %v1085, 0.0
    %v1102 = vmax.f32 %v1086, 0.0
    %v1103 = vrsqrt.pop %v1087
    %v1104 = vmul.f32 %v1087, %v1103
    %vm1105 = vcmp.eq.f32.partialorder %v1087, inf
    %v1106 = vsel %vm1105, %v1087, %v1104
    %vm1107 = vcmp.eq.f32.partialorder %v1087, 0.0
    %v1108 = vand.u32 %v1087, 2147483648
    %v1109 = vsel %vm1107, %v1108, %v1106
    %v1110 = vrsqrt.pop %v1088
    %v1111 = vmul.f32 %v1088, %v1110
    %vm1112 = vcmp.eq.f32.partialorder %v1088, inf
    %v1113 = vsel %vm1112, %v1088, %v1111
    %vm1114 = vcmp.eq.f32.partialorder %v1088, 0.0
    %v1115 = vand.u32 %v1088, 2147483648
    %v1116 = vsel %vm1114, %v1115, %v1113
    %v1117 = vrsqrt.pop %v1089
    %v1118 = vmul.f32 %v1089, %v1117
    %vm1119 = vcmp.eq.f32.partialorder %v1089, inf
    %v1120 = vsel %vm1119, %v1089, %v1118
    %vm1121 = vcmp.eq.f32.partialorder %v1089, 0.0
    %v1122 = vand.u32 %v1089, 2147483648
    %v1123 = vsel %vm1121, %v1122, %v1120
    %v1124 = vrsqrt.pop %v1090
    %v1125 = vmul.f32 %v1090, %v1124
    %vm1126 = vcmp.eq.f32.partialorder %v1090, inf
    %v1127 = vsel %vm1126, %v1090, %v1125
    %vm1128 = vcmp.eq.f32.partialorder %v1090, 0.0
    %v1129 = vand.u32 %v1090, 2147483648
    %v1130 = vsel %vm1128, %v1129, %v1127
    %v1131 = vrsqrt.pop %v1091
    %v1132 = vmul.f32 %v1091, %v1131
    %vm1133 = vcmp.eq.f32.partialorder %v1091, inf
    %v1134 = vsel %vm1133, %v1091, %v1132
    %vm1135 = vcmp.eq.f32.partialorder %v1091, 0.0
    %v1136 = vand.u32 %v1091, 2147483648
    %v1137 = vsel %vm1135, %v1136, %v1134
    %v1138 = vrsqrt.pop %v1092
    %v1139 = vmul.f32 %v1092, %v1138
    %vm1140 = vcmp.eq.f32.partialorder %v1092, inf
    %v1141 = vsel %vm1140, %v1092, %v1139
    %vm1142 = vcmp.eq.f32.partialorder %v1092, 0.0
    %v1143 = vand.u32 %v1092, 2147483648
    %v1144 = vsel %vm1142, %v1143, %v1141
    %v1145 = vrsqrt.pop %v1093
    %v1146 = vmul.f32 %v1093, %v1145
    %vm1147 = vcmp.eq.f32.partialorder %v1093, inf
    %v1148 = vsel %vm1147, %v1093, %v1146
    %vm1149 = vcmp.eq.f32.partialorder %v1093, 0.0
    %v1150 = vand.u32 %v1093, 2147483648
    %v1151 = vsel %vm1149, %v1150, %v1148
    %v1152 = vrsqrt.pop %v1094
    %v1153 = vmul.f32 %v1094, %v1152
    %vm1154 = vcmp.eq.f32.partialorder %v1094, inf
    %v1155 = vsel %vm1154, %v1094, %v1153
    %vm1156 = vcmp.eq.f32.partialorder %v1094, 0.0
    %v1157 = vand.u32 %v1094, 2147483648
    %v1158 = vsel %vm1156, %v1157, %v1155
    %v1159 = vrsqrt.pop %v1095
    %v1160 = vmul.f32 %v1095, %v1159
    %vm1161 = vcmp.eq.f32.partialorder %v1095, inf
    %v1162 = vsel %vm1161, %v1095, %v1160
    %vm1163 = vcmp.eq.f32.partialorder %v1095, 0.0
    %v1164 = vand.u32 %v1095, 2147483648
    %v1165 = vsel %vm1163, %v1164, %v1162
    %v1166 = vrsqrt.pop %v1096
    %v1167 = vmul.f32 %v1096, %v1166
    %vm1168 = vcmp.eq.f32.partialorder %v1096, inf
    %v1169 = vsel %vm1168, %v1096, %v1167
    %vm1170 = vcmp.eq.f32.partialorder %v1096, 0.0
    %v1171 = vand.u32 %v1096, 2147483648
    %v1172 = vsel %vm1170, %v1171, %v1169
    %v1173 = vrsqrt.pop %v1097
    %v1174 = vmul.f32 %v1097, %v1173
    %vm1175 = vcmp.eq.f32.partialorder %v1097, inf
    %v1176 = vsel %vm1175, %v1097, %v1174
    %vm1177 = vcmp.eq.f32.partialorder %v1097, 0.0
    %v1178 = vand.u32 %v1097, 2147483648
    %v1179 = vsel %vm1177, %v1178, %v1176
    %v1180 = vrsqrt.pop %v1098
    %v1181 = vmul.f32 %v1098, %v1180
    %vm1182 = vcmp.eq.f32.partialorder %v1098, inf
    %v1183 = vsel %vm1182, %v1098, %v1181
    %vm1184 = vcmp.eq.f32.partialorder %v1098, 0.0
    %v1185 = vand.u32 %v1098, 2147483648
    %v1186 = vsel %vm1184, %v1185, %v1183
    %v1187 = vrsqrt.pop %v1099
    %v1188 = vmul.f32 %v1099, %v1187
    %vm1189 = vcmp.eq.f32.partialorder %v1099, inf
    %v1190 = vsel %vm1189, %v1099, %v1188
    %vm1191 = vcmp.eq.f32.partialorder %v1099, 0.0
    %v1192 = vand.u32 %v1099, 2147483648
    %v1193 = vsel %vm1191, %v1192, %v1190
    %v1194 = vrsqrt.pop %v1100
    %v1195 = vmul.f32 %v1100, %v1194
    %vm1196 = vcmp.eq.f32.partialorder %v1100, inf
    %v1197 = vsel %vm1196, %v1100, %v1195
    %vm1198 = vcmp.eq.f32.partialorder %v1100, 0.0
    %v1199 = vand.u32 %v1100, 2147483648
    %v1200 = vsel %vm1198, %v1199, %v1197
    %v1201 = vrsqrt.pop %v1101
    %v1202 = vmul.f32 %v1101, %v1201
    %vm1203 = vcmp.eq.f32.partialorder %v1101, inf
    %v1204 = vsel %vm1203, %v1101, %v1202
    %vm1205 = vcmp.eq.f32.partialorder %v1101, 0.0
    %v1206 = vand.u32 %v1101, 2147483648
    %v1207 = vsel %vm1205, %v1206, %v1204
    %v1208 = vrsqrt.pop %v1102
    %v1209 = vmul.f32 %v1102, %v1208
    %vm1210 = vcmp.eq.f32.partialorder %v1102, inf
    %v1211 = vsel %vm1210, %v1102, %v1209
    %vm1212 = vcmp.eq.f32.partialorder %v1102, 0.0
    %v1213 = vand.u32 %v1102, 2147483648
    %v1214 = vsel %vm1212, %v1213, %v1211
    %v1215 = vsub.f32 %v965, %v1109
    %v1216 = vsub.f32 %v972, %v1116
    %v1217 = vsub.f32 %v979, %v1123
    %v1218 = vsub.f32 %v986, %v1130
    %v1219 = vsub.f32 %v993, %v1137
    %v1220 = vsub.f32 %v1000, %v1144
    %v1221 = vsub.f32 %v1007, %v1151
    %v1222 = vsub.f32 %v1014, %v1158
    %v1223 = vsub.f32 %v1021, %v1165
    %v1224 = vsub.f32 %v1028, %v1172
    %v1225 = vsub.f32 %v1035, %v1179
    %v1226 = vsub.f32 %v1042, %v1186
    %v1227 = vsub.f32 %v1049, %v1193
    %v1228 = vsub.f32 %v1056, %v1200
    %v1229 = vsub.f32 %v1063, %v1207
    %v1230 = vsub.f32 %v1070, %v1214
    %1247 = vrot.lane.b32.xlu0 %v849, 96
    %v1248 = vpop.permute.xlu0 %1247
    %1249 = vrot.lane.b32.xlu0 %v852, 96
    %v1250 = vpop.permute.xlu0 %1249
    %1251 = vrot.lane.b32.xlu0 %v857, 96
    %v1252 = vpop.permute.xlu0 %1251
    %1253 = vrot.lane.b32.xlu0 %v860, 96
    %v1254 = vpop.permute.xlu0 %1253
    %1255 = vrot.lane.b32.xlu0 %v865, 96
    %v1256 = vpop.permute.xlu0 %1255
    %1257 = vrot.lane.b32.xlu0 %v868, 96
    %v1258 = vpop.permute.xlu0 %1257
    %1259 = vrot.lane.b32.xlu0 %v873, 96
    %v1260 = vpop.permute.xlu0 %1259
    %1261 = vrot.lane.b32.xlu0 %v876, 96
    %v1262 = vpop.permute.xlu0 %1261
    %1263 = vrot.lane.b32.xlu0 %v881, 96
    %v1264 = vpop.permute.xlu0 %1263
    %1265 = vrot.lane.b32.xlu0 %v884, 96
    %v1266 = vpop.permute.xlu0 %1265
    %1267 = vrot.lane.b32.xlu0 %v889, 96
    %v1268 = vpop.permute.xlu0 %1267
    %1269 = vrot.lane.b32.xlu0 %v892, 96
    %v1270 = vpop.permute.xlu0 %1269
    %1271 = vrot.lane.b32.xlu0 %v897, 96
    %v1272 = vpop.permute.xlu0 %1271
    %1273 = vrot.lane.b32.xlu0 %v900, 96
    %v1274 = vpop.permute.xlu0 %1273
    %1275 = vrot.lane.b32.xlu0 %v905, 96
    %v1276 = vpop.permute.xlu0 %1275
    %1277 = vrot.lane.b32.xlu0 %v908, 96
    %v1278 = vpop.permute.xlu0 %1277
    %v1295 = vadd.f32 %v1215, %v1248
    %v1296 = vadd.f32 %v1216, %v1250
    %v1297 = vadd.f32 %v1217, %v1252
    %v1298 = vadd.f32 %v1218, %v1254
    %v1299 = vadd.f32 %v1219, %v1256
    %v1300 = vadd.f32 %v1220, %v1258
    %v1301 = vadd.f32 %v1221, %v1260
    %v1302 = vadd.f32 %v1222, %v1262
    %v1303 = vadd.f32 %v1223, %v1264
    %v1304 = vadd.f32 %v1224, %v1266
    %v1305 = vadd.f32 %v1225, %v1268
    %v1306 = vadd.f32 %v1226, %v1270
    %v1307 = vadd.f32 %v1227, %v1272
    %v1308 = vadd.f32 %v1228, %v1274
    %v1309 = vadd.f32 %v1229, %v1276
    %v1310 = vadd.f32 %v1230, %v1278
    %1311 = vst.msk [vmem:[%s17] sm:$0xff] %vm789, %v1295
    %1312 = vst.msk [vmem:[%s17 + $0x8] sm:$0xff] %vm789, %v1296
    %1313 = vst.msk [vmem:[%s17 + $0x10] sm:$0xff] %vm789, %v1297
    %1314 = vst.msk [vmem:[%s17 + $0x18] sm:$0xff] %vm789, %v1298
    %1315 = vst.msk [vmem:[%s17 + $0x20] sm:$0xff] %vm789, %v1299
    %1316 = vst.msk [vmem:[%s17 + $0x28] sm:$0xff] %vm789, %v1300
    %1317 = vst.msk [vmem:[%s17 + $0x30] sm:$0xff] %vm789, %v1301
    %1318 = vst.msk [vmem:[%s17 + $0x38] sm:$0xff] %vm789, %v1302
    %1319 = vst.msk [vmem:[%s17 + $0x40] sm:$0xff] %vm789, %v1303
    %1320 = vst.msk [vmem:[%s17 + $0x48] sm:$0xff] %vm789, %v1304
    %1321 = vst.msk [vmem:[%s17 + $0x50] sm:$0xff] %vm789, %v1305
    %1322 = vst.msk [vmem:[%s17 + $0x58] sm:$0xff] %vm789, %v1306
    %1323 = vst.msk [vmem:[%s17 + $0x60] sm:$0xff] %vm789, %v1307
    %1324 = vst.msk [vmem:[%s17 + $0x68] sm:$0xff] %vm789, %v1308
    %1325 = vst.msk [vmem:[%s17 + $0x70] sm:$0xff] %vm789, %v1309
    %1326 = vst.msk [vmem:[%s17 + $0x78] sm:$0xff] %vm789, %v1310
    %v1327 = vld [vmem:[%s13] sm:$0xff]
    %v1328 = vld [vmem:[%s13 + $0x8] sm:$0xff]
    %v1329 = vld [vmem:[%s13 + $0x10] sm:$0xff]
    %v1330 = vld [vmem:[%s13 + $0x18] sm:$0xff]
    %v1332 = vsel %vm789, %v1295, 0
    %v1335 = vsel %vm789, %v1296, 0
    %v1338 = vsel %vm789, %v1297, 0
    %v1341 = vsel %vm789, %v1298, 0
    %v1344 = vsel %vm789, %v1299, 0
    %v1347 = vsel %vm789, %v1300, 0
    %v1350 = vsel %vm789, %v1301, 0
    %v1353 = vsel %vm789, %v1302, 0
    %v1356 = vsel %vm789, %v1303, 0
    %v1359 = vsel %vm789, %v1304, 0
    %v1362 = vsel %vm789, %v1305, 0
    %v1365 = vsel %vm789, %v1306, 0
    %v1368 = vsel %vm789, %v1307, 0
    %v1371 = vsel %vm789, %v1308, 0
    %v1374 = vsel %vm789, %v1309, 0
    %v1377 = vsel %vm789, %v1310, 0
    %1379 = vmatprep.subr.mxu0 0.0
    %1380 = vmatpush1.msra.mxu0 0.0
    %1381 = vmatprep.subr.mxu0 0.0
    %1382 = vmatpush1.msra.mxu0 0.0
    %1383 = vmatprep.subr.mxu0 0.0
    %1384 = vmatpush1.msra.mxu0 0.0
    %1385 = vmatprep.subr.mxu0 0.0
    %1386 = vmatpush1.msra.mxu0 0.0
    %1387 = vmatprep.subr.mxu0 0.0
    %1388 = vmatpush1.msra.mxu0 0.0
    %1389 = vmatprep.subr.mxu0 0.0
    %1390 = vmatpush1.msra.mxu0 0.0
    %1391 = vmatprep.subr.mxu0 0.0
    %1392 = vmatpush1.msra.mxu0 0.0
    %1393 = vmatprep.subr.mxu0 0.0
    %1394 = vmatpush1.msra.mxu0 0.0
    %1395 = vmatprep.subr.mxu0 0.0
    %1396 = vmatpush1.msra.mxu0 0.0
    %1397 = vmatprep.subr.mxu0 0.0
    %1398 = vmatpush1.msra.mxu0 0.0
    %1399 = vmatprep.subr.mxu0 0.0
    %1400 = vmatpush1.msra.mxu0 0.0
    %1401 = vmatprep.subr.mxu0 0.0
    %1402 = vmatpush1.msra.mxu0 0.0
    %1403 = vmatprep.subr.mxu0 0.0
    %1404 = vmatpush1.msra.mxu0 %v1330
    %1405 = vmatprep.subr.mxu0 0.0
    %1406 = vmatpush1.msra.mxu0 %v1329
    %1407 = vmatprep.subr.mxu0 0.0
    %1408 = vmatpush1.msra.mxu0 %v1328
    %1409 = vmatprep.subr.mxu0 0.0
    %1410 = vmatpush1.msra.mxu0 %v1327
    %1411 = vmatprep.subr.mxu0 0.0
    %1412 = vmatpush2.msra.mxu0 0.0
    %1413 = vmatprep.subr.mxu0 0.0
    %1414 = vmatpush2.msra.mxu0 0.0
    %1415 = vmatprep.subr.mxu0 0.0
    %1416 = vmatpush2.msra.mxu0 0.0
    %1417 = vmatprep.subr.mxu0 0.0
    %1418 = vmatpush2.msra.mxu0 0.0
    %1419 = vmatprep.subr.mxu0 0.0
    %1420 = vmatpush2.msra.mxu0 0.0
    %1421 = vmatprep.subr.mxu0 0.0
    %1422 = vmatpush2.msra.mxu0 0.0
    %1423 = vmatprep.subr.mxu0 0.0
    %1424 = vmatpush2.msra.mxu0 0.0
    %1425 = vmatprep.subr.mxu0 0.0
    %1426 = vmatpush2.msra.mxu0 0.0
    %1427 = vmatprep.subr.mxu0 0.0
    %1428 = vmatpush2.msra.mxu0 0.0
    %1429 = vmatprep.subr.mxu0 0.0
    %1430 = vmatpush2.msra.mxu0 0.0
    %1431 = vmatprep.subr.mxu0 0.0
    %1432 = vmatpush2.msra.mxu0 0.0
    %1433 = vmatprep.subr.mxu0 0.0
    %1434 = vmatpush2.msra.mxu0 0.0
    %1435 = vmatprep.subr.mxu0 0.0
    %1436 = vmatpush2.msra.mxu0 0.0
    %1437 = vmatprep.subr.mxu0 0.0
    %1438 = vmatpush2.msra.mxu0 0.0
    %1439 = vmatprep.subr.mxu0 0.0
    %1440 = vmatpush2.msra.mxu0 0.0
    %1441 = vmatprep.subr.mxu0 0.0
    %1442 = vmatpush2.msra.mxu0 0.0
    %1443 = vmatprep.mubr.f32.mxu0 0.0
    %1444 = vmatmul.mubr.f32.gmra.mxu0 %v1332
    %v1445 = vpop.f32.mrf.mxu0
    %v1446 = vadd.f32 0.0, %v1445
    %v1447 = vpop.f32.mrf.mxu0
    %1448 = vmatprep.mubr.f32.mxu0 0.0
    %1449 = vmatmul.mubr.f32.gmra.mxu0 %v1335
    %v1450 = vpop.f32.mrf.mxu0
    %v1451 = vadd.f32 0.0, %v1450
    %v1452 = vpop.f32.mrf.mxu0
    %1453 = vmatprep.mubr.f32.mxu0 0.0
    %1454 = vmatmul.mubr.f32.gmra.mxu0 %v1338
    %v1455 = vpop.f32.mrf.mxu0
    %v1456 = vadd.f32 0.0, %v1455
    %v1457 = vpop.f32.mrf.mxu0
    %1458 = vmatprep.mubr.f32.mxu0 0.0
    %1459 = vmatmul.mubr.f32.gmra.mxu0 %v1341
    %v1460 = vpop.f32.mrf.mxu0
    %v1461 = vadd.f32 0.0, %v1460
    %v1462 = vpop.f32.mrf.mxu0
    %1463 = vmatprep.mubr.f32.mxu0 0.0
    %1464 = vmatmul.mubr.f32.gmra.mxu0 %v1344
    %v1465 = vpop.f32.mrf.mxu0
    %v1466 = vadd.f32 0.0, %v1465
    %v1467 = vpop.f32.mrf.mxu0
    %1468 = vmatprep.mubr.f32.mxu0 0.0
    %1469 = vmatmul.mubr.f32.gmra.mxu0 %v1347
    %v1470 = vpop.f32.mrf.mxu0
    %v1471 = vadd.f32 0.0, %v1470
    %v1472 = vpop.f32.mrf.mxu0
    %1473 = vmatprep.mubr.f32.mxu0 0.0
    %1474 = vmatmul.mubr.f32.gmra.mxu0 %v1350
    %v1475 = vpop.f32.mrf.mxu0
    %v1476 = vadd.f32 0.0, %v1475
    %v1477 = vpop.f32.mrf.mxu0
    %1478 = vmatprep.mubr.f32.mxu0 0.0
    %1479 = vmatmul.mubr.f32.gmra.mxu0 %v1353
    %v1480 = vpop.f32.mrf.mxu0
    %v1481 = vadd.f32 0.0, %v1480
    %v1482 = vpop.f32.mrf.mxu0
    %1483 = vmatprep.mubr.f32.mxu0 0.0
    %1484 = vmatmul.mubr.f32.gmra.mxu0 %v1356
    %v1485 = vpop.f32.mrf.mxu0
    %v1486 = vadd.f32 0.0, %v1485
    %v1487 = vpop.f32.mrf.mxu0
    %1488 = vmatprep.mubr.f32.mxu0 0.0
    %1489 = vmatmul.mubr.f32.gmra.mxu0 %v1359
    %v1490 = vpop.f32.mrf.mxu0
    %v1491 = vadd.f32 0.0, %v1490
    %v1492 = vpop.f32.mrf.mxu0
    %1493 = vmatprep.mubr.f32.mxu0 0.0
    %1494 = vmatmul.mubr.f32.gmra.mxu0 %v1362
    %v1495 = vpop.f32.mrf.mxu0
    %v1496 = vadd.f32 0.0, %v1495
    %v1497 = vpop.f32.mrf.mxu0
    %1498 = vmatprep.mubr.f32.mxu0 0.0
    %1499 = vmatmul.mubr.f32.gmra.mxu0 %v1365
    %v1500 = vpop.f32.mrf.mxu0
    %v1501 = vadd.f32 0.0, %v1500
    %v1502 = vpop.f32.mrf.mxu0
    %1503 = vmatprep.mubr.f32.mxu0 0.0
    %1504 = vmatmul.mubr.f32.gmra.mxu0 %v1368
    %v1505 = vpop.f32.mrf.mxu0
    %v1506 = vadd.f32 0.0, %v1505
    %v1507 = vpop.f32.mrf.mxu0
    %1508 = vmatprep.mubr.f32.mxu0 0.0
    %1509 = vmatmul.mubr.f32.gmra.mxu0 %v1371
    %v1510 = vpop.f32.mrf.mxu0
    %v1511 = vadd.f32 0.0, %v1510
    %v1512 = vpop.f32.mrf.mxu0
    %1513 = vmatprep.mubr.f32.mxu0 0.0
    %1514 = vmatmul.mubr.f32.gmra.mxu0 %v1374
    %v1515 = vpop.f32.mrf.mxu0
    %v1516 = vadd.f32 0.0, %v1515
    %v1517 = vpop.f32.mrf.mxu0
    %1518 = vmatprep.mubr.f32.mxu0 0.0
    %1519 = vmatmul.mubr.f32.gmra.mxu0 %v1377
    %v1520 = vpop.f32.mrf.mxu0
    %v1521 = vadd.f32 0.0, %v1520
    %v1522 = vpop.f32.mrf.mxu0
    %1523 = vdwg.mxu0
    %v1524 = vmax.f32 %v1446, -5.0
    %v1525 = vmax.f32 %v1451, -5.0
    %v1526 = vmax.f32 %v1456, -5.0
    %v1527 = vmax.f32 %v1461, -5.0
    %v1528 = vmax.f32 %v1466, -5.0
    %v1529 = vmax.f32 %v1471, -5.0
    %v1530 = vmax.f32 %v1476, -5.0
    %v1531 = vmax.f32 %v1481, -5.0
    %v1532 = vmax.f32 %v1486, -5.0
    %v1533 = vmax.f32 %v1491, -5.0
    %v1534 = vmax.f32 %v1496, -5.0
    %v1535 = vmax.f32 %v1501, -5.0
    %v1536 = vmax.f32 %v1506, -5.0
    %v1537 = vmax.f32 %v1511, -5.0
    %v1538 = vmax.f32 %v1516, -5.0
    %v1539 = vmax.f32 %v1521, -5.0
    %v1540 = vmin.f32 %v1524, 5.0
    %v1541 = vmin.f32 %v1525, 5.0
    %v1542 = vmin.f32 %v1526, 5.0
    %v1543 = vmin.f32 %v1527, 5.0
    %v1544 = vmin.f32 %v1528, 5.0
    %v1545 = vmin.f32 %v1529, 5.0
    %v1546 = vmin.f32 %v1530, 5.0
    %v1547 = vmin.f32 %v1531, 5.0
    %v1548 = vmin.f32 %v1532, 5.0
    %v1549 = vmin.f32 %v1533, 5.0
    %v1550 = vmin.f32 %v1534, 5.0
    %v1551 = vmin.f32 %v1535, 5.0
    %v1552 = vmin.f32 %v1536, 5.0
    %v1553 = vmin.f32 %v1537, 5.0
    %v1554 = vmin.f32 %v1538, 5.0
    %v1555 = vmin.f32 %v1539, 5.0
    %v1556 = vmul.f32 %v1540, 1.442695
    %v1557 = vpow.pop %v1556
    %v1558 = vmul.f32 %v1541, 1.442695
    %v1559 = vpow.pop %v1558
    %v1560 = vmul.f32 %v1542, 1.442695
    %v1561 = vpow.pop %v1560
    %v1562 = vmul.f32 %v1543, 1.442695
    %v1563 = vpow.pop %v1562
    %v1564 = vmul.f32 %v1544, 1.442695
    %v1565 = vpow.pop %v1564
    %v1566 = vmul.f32 %v1545, 1.442695
    %v1567 = vpow.pop %v1566
    %v1568 = vmul.f32 %v1546, 1.442695
    %v1569 = vpow.pop %v1568
    %v1570 = vmul.f32 %v1547, 1.442695
    %v1571 = vpow.pop %v1570
    %v1572 = vmul.f32 %v1548, 1.442695
    %v1573 = vpow.pop %v1572
    %v1574 = vmul.f32 %v1549, 1.442695
    %v1575 = vpow.pop %v1574
    %v1576 = vmul.f32 %v1550, 1.442695
    %v1577 = vpow.pop %v1576
    %v1578 = vmul.f32 %v1551, 1.442695
    %v1579 = vpow.pop %v1578
    %v1580 = vmul.f32 %v1552, 1.442695
    %v1581 = vpow.pop %v1580
    %v1582 = vmul.f32 %v1553, 1.442695
    %v1583 = vpow.pop %v1582
    %v1584 = vmul.f32 %v1554, 1.442695
    %v1585 = vpow.pop %v1584
    %v1586 = vmul.f32 %v1555, 1.442695
    %v1587 = vpow.pop %v1586
    %v1588 = vld [vmem:[%s14] sm:$0x3]
    %vm1589 = vcmask 15360
    %v1591 = vsel %vm1589, %v1557, 0
    %v1594 = vsel %vm1589, %v1559, 0
    %v1597 = vsel %vm1589, %v1561, 0
    %v1600 = vsel %vm1589, %v1563, 0
    %v1603 = vsel %vm1589, %v1565, 0
    %v1606 = vsel %vm1589, %v1567, 0
    %v1609 = vsel %vm1589, %v1569, 0
    %v1612 = vsel %vm1589, %v1571, 0
    %v1615 = vsel %vm1589, %v1573, 0
    %v1618 = vsel %vm1589, %v1575, 0
    %v1621 = vsel %vm1589, %v1577, 0
    %v1624 = vsel %vm1589, %v1579, 0
    %v1627 = vsel %vm1589, %v1581, 0
    %v1630 = vsel %vm1589, %v1583, 0
    %v1633 = vsel %vm1589, %v1585, 0
    %v1636 = vsel %vm1589, %v1587, 0
    %vm1638 = vcmask 1041408
    %v1640 = vsel %vm1638, %v1588, 0
    %1642 = vmatprep.subr.mxu0 0.0
    %1643 = vmatpush1.msra.mxu0 0.0
    %1644 = vmatprep.subr.mxu0 0.0
    %1645 = vmatpush1.msra.mxu0 0.0
    %1646 = vmatprep.subr.mxu0 0.0
    %1647 = vmatpush1.msra.mxu0 0.0
    %1648 = vmatprep.subr.mxu0 0.0
    %1649 = vmatpush1.msra.mxu0 0.0
    %1650 = vmatprep.subr.mxu0 0.0
    %1651 = vmatpush1.msra.mxu0 0.0
    %1652 = vmatprep.subr.mxu0 0.0
    %1653 = vmatpush1.msra.mxu0 0.0
    %1654 = vmatprep.subr.mxu0 0.0
    %1655 = vmatpush1.msra.mxu0 0.0
    %1656 = vmatprep.subr.mxu0 0.0
    %1657 = vmatpush1.msra.mxu0 0.0
    %1658 = vmatprep.subr.mxu0 0.0
    %1659 = vmatpush1.msra.mxu0 0.0
    %1660 = vmatprep.subr.mxu0 0.0
    %1661 = vmatpush1.msra.mxu0 0.0
    %1662 = vmatprep.subr.mxu0 0.0
    %1663 = vmatpush1.msra.mxu0 0.0
    %1664 = vmatprep.subr.mxu0 0.0
    %1665 = vmatpush1.msra.mxu0 0.0
    %1666 = vmatprep.subr.mxu0 0.0
    %1667 = vmatpush1.msra.mxu0 0.0
    %1668 = vmatprep.subr.mxu0 0.0
    %1669 = vmatpush1.msra.mxu0 0.0
    %1670 = vmatprep.subr.mxu0 0.0
    %1671 = vmatpush1.msra.mxu0 0.0
    %1672 = vmatprep.subr.mxu0 0.0
    %1673 = vmatpush1.msra.mxu0 %v1640
    %1674 = vmatprep.subr.mxu0 0.0
    %1675 = vmatpush2.msra.mxu0 0.0
    %1676 = vmatprep.subr.mxu0 0.0
    %1677 = vmatpush2.msra.mxu0 0.0
    %1678 = vmatprep.subr.mxu0 0.0
    %1679 = vmatpush2.msra.mxu0 0.0
    %1680 = vmatprep.subr.mxu0 0.0
    %1681 = vmatpush2.msra.mxu0 0.0
    %1682 = vmatprep.subr.mxu0 0.0
    %1683 = vmatpush2.msra.mxu0 0.0
    %1684 = vmatprep.subr.mxu0 0.0
    %1685 = vmatpush2.msra.mxu0 0.0
    %1686 = vmatprep.subr.mxu0 0.0
    %1687 = vmatpush2.msra.mxu0 0.0
    %1688 = vmatprep.subr.mxu0 0.0
    %1689 = vmatpush2.msra.mxu0 0.0
    %1690 = vmatprep.subr.mxu0 0.0
    %1691 = vmatpush2.msra.mxu0 0.0
    %1692 = vmatprep.subr.mxu0 0.0
    %1693 = vmatpush2.msra.mxu0 0.0
    %1694 = vmatprep.subr.mxu0 0.0
    %1695 = vmatpush2.msra.mxu0 0.0
    %1696 = vmatprep.subr.mxu0 0.0
    %1697 = vmatpush2.msra.mxu0 0.0
    %1698 = vmatprep.subr.mxu0 0.0
    %1699 = vmatpush2.msra.mxu0 0.0
    %1700 = vmatprep.subr.mxu0 0.0
    %1701 = vmatpush2.msra.mxu0 0.0
    %1702 = vmatprep.subr.mxu0 0.0
    %1703 = vmatpush2.msra.mxu0 0.0
    %1704 = vmatprep.subr.mxu0 0.0
    %1705 = vmatpush2.msra.mxu0 0.0
    %1706 = vmatprep.mubr.f32.mxu0 0.0
    %1707 = vmatmul.mubr.f32.gmra.mxu0 %v1591
    %v1708 = vpop.f32.mrf.mxu0
    %v1709 = vadd.f32 0.0, %v1708
    %v1710 = vpop.f32.mrf.mxu0
    %1711 = vmatprep.mubr.f32.mxu0 0.0
    %1712 = vmatmul.mubr.f32.gmra.mxu0 %v1594
    %v1713 = vpop.f32.mrf.mxu0
    %v1714 = vadd.f32 0.0, %v1713
    %v1715 = vpop.f32.mrf.mxu0
    %1716 = vmatprep.mubr.f32.mxu0 0.0
    %1717 = vmatmul.mubr.f32.gmra.mxu0 %v1597
    %v1718 = vpop.f32.mrf.mxu0
    %v1719 = vadd.f32 0.0, %v1718
    %v1720 = vpop.f32.mrf.mxu0
    %1721 = vmatprep.mubr.f32.mxu0 0.0
    %1722 = vmatmul.mubr.f32.gmra.mxu0 %v1600
    %v1723 = vpop.f32.mrf.mxu0
    %v1724 = vadd.f32 0.0, %v1723
    %v1725 = vpop.f32.mrf.mxu0
    %1726 = vmatprep.mubr.f32.mxu0 0.0
    %1727 = vmatmul.mubr.f32.gmra.mxu0 %v1603
    %v1728 = vpop.f32.mrf.mxu0
    %v1729 = vadd.f32 0.0, %v1728
    %v1730 = vpop.f32.mrf.mxu0
    %1731 = vmatprep.mubr.f32.mxu0 0.0
    %1732 = vmatmul.mubr.f32.gmra.mxu0 %v1606
    %v1733 = vpop.f32.mrf.mxu0
    %v1734 = vadd.f32 0.0, %v1733
    %v1735 = vpop.f32.mrf.mxu0
    %1736 = vmatprep.mubr.f32.mxu0 0.0
    %1737 = vmatmul.mubr.f32.gmra.mxu0 %v1609
    %v1738 = vpop.f32.mrf.mxu0
    %v1739 = vadd.f32 0.0, %v1738
    %v1740 = vpop.f32.mrf.mxu0
    %1741 = vmatprep.mubr.f32.mxu0 0.0
    %1742 = vmatmul.mubr.f32.gmra.mxu0 %v1612
    %v1743 = vpop.f32.mrf.mxu0
    %v1744 = vadd.f32 0.0, %v1743
    %v1745 = vpop.f32.mrf.mxu0
    %1746 = vmatprep.mubr.f32.mxu0 0.0
    %1747 = vmatmul.mubr.f32.gmra.mxu0 %v1615
    %v1748 = vpop.f32.mrf.mxu0
    %v1749 = vadd.f32 0.0, %v1748
    %v1750 = vpop.f32.mrf.mxu0
    %1751 = vmatprep.mubr.f32.mxu0 0.0
    %1752 = vmatmul.mubr.f32.gmra.mxu0 %v1618
    %v1753 = vpop.f32.mrf.mxu0
    %v1754 = vadd.f32 0.0, %v1753
    %v1755 = vpop.f32.mrf.mxu0
    %1756 = vmatprep.mubr.f32.mxu0 0.0
    %1757 = vmatmul.mubr.f32.gmra.mxu0 %v1621
    %v1758 = vpop.f32.mrf.mxu0
    %v1759 = vadd.f32 0.0, %v1758
    %v1760 = vpop.f32.mrf.mxu0
    %1761 = vmatprep.mubr.f32.mxu0 0.0
    %1762 = vmatmul.mubr.f32.gmra.mxu0 %v1624
    %v1763 = vpop.f32.mrf.mxu0
    %v1764 = vadd.f32 0.0, %v1763
    %v1765 = vpop.f32.mrf.mxu0
    %1766 = vmatprep.mubr.f32.mxu0 0.0
    %1767 = vmatmul.mubr.f32.gmra.mxu0 %v1627
    %v1768 = vpop.f32.mrf.mxu0
    %v1769 = vadd.f32 0.0, %v1768
    %v1770 = vpop.f32.mrf.mxu0
    %1771 = vmatprep.mubr.f32.mxu0 0.0
    %1772 = vmatmul.mubr.f32.gmra.mxu0 %v1630
    %v1773 = vpop.f32.mrf.mxu0
    %v1774 = vadd.f32 0.0, %v1773
    %v1775 = vpop.f32.mrf.mxu0
    %1776 = vmatprep.mubr.f32.mxu0 0.0
    %1777 = vmatmul.mubr.f32.gmra.mxu0 %v1633
    %v1778 = vpop.f32.mrf.mxu0
    %v1779 = vadd.f32 0.0, %v1778
    %v1780 = vpop.f32.mrf.mxu0
    %1781 = vmatprep.mubr.f32.mxu0 0.0
    %1782 = vmatmul.mubr.f32.gmra.mxu0 %v1636
    %v1783 = vpop.f32.mrf.mxu0
    %v1784 = vadd.f32 0.0, %v1783
    %v1785 = vpop.f32.mrf.mxu0
    %1786 = vdwg.mxu0
    %1803 = vrot.lane.b32.xlu0 %v1709, 32
    %v1804 = vpop.permute.xlu0 %1803
    %1805 = vrot.lane.b32.xlu0 %v1714, 32
    %v1806 = vpop.permute.xlu0 %1805
    %1807 = vrot.lane.b32.xlu0 %v1719, 32
    %v1808 = vpop.permute.xlu0 %1807
    %1809 = vrot.lane.b32.xlu0 %v1724, 32
    %v1810 = vpop.permute.xlu0 %1809
    %1811 = vrot.lane.b32.xlu0 %v1729, 32
    %v1812 = vpop.permute.xlu0 %1811
    %1813 = vrot.lane.b32.xlu0 %v1734, 32
    %v1814 = vpop.permute.xlu0 %1813
    %1815 = vrot.lane.b32.xlu0 %v1739, 32
    %v1816 = vpop.permute.xlu0 %1815
    %1817 = vrot.lane.b32.xlu0 %v1744, 32
    %v1818 = vpop.permute.xlu0 %1817
    %1819 = vrot.lane.b32.xlu0 %v1749, 32
    %v1820 = vpop.permute.xlu0 %1819
    %1821 = vrot.lane.b32.xlu0 %v1754, 32
    %v1822 = vpop.permute.xlu0 %1821
    %1823 = vrot.lane.b32.xlu0 %v1759, 32
    %v1824 = vpop.permute.xlu0 %1823
    %1825 = vrot.lane.b32.xlu0 %v1764, 32
    %v1826 = vpop.permute.xlu0 %1825
    %1827 = vrot.lane.b32.xlu0 %v1769, 32
    %v1828 = vpop.permute.xlu0 %1827
    %1829 = vrot.lane.b32.xlu0 %v1774, 32
    %v1830 = vpop.permute.xlu0 %1829
    %1831 = vrot.lane.b32.xlu0 %v1779, 32
    %v1832 = vpop.permute.xlu0 %1831
    %1833 = vrot.lane.b32.xlu0 %v1784, 32
    %v1834 = vpop.permute.xlu0 %1833
    %v1851 = vmul.f32 %v523, %v1804
    %v1852 = vmul.f32 %v526, %v1806
    %v1853 = vmul.f32 %v531, %v1808
    %v1854 = vmul.f32 %v534, %v1810
    %v1855 = vmul.f32 %v539, %v1812
    %v1856 = vmul.f32 %v542, %v1814
    %v1857 = vmul.f32 %v547, %v1816
    %v1858 = vmul.f32 %v550, %v1818
    %v1859 = vmul.f32 %v555, %v1820
    %v1860 = vmul.f32 %v558, %v1822
    %v1861 = vmul.f32 %v563, %v1824
    %v1862 = vmul.f32 %v566, %v1826
    %v1863 = vmul.f32 %v571, %v1828
    %v1864 = vmul.f32 %v574, %v1830
    %v1865 = vmul.f32 %v579, %v1832
    %v1866 = vmul.f32 %v582, %v1834
    %v1867 = vpack.c.bf16 %v1852, %v1851
    %v1868 = vpack.c.bf16 %v1854, %v1853
    %v1869 = vpack.c.bf16 %v1856, %v1855
    %v1870 = vpack.c.bf16 %v1858, %v1857
    %v1871 = vpack.c.bf16 %v1860, %v1859
    %v1872 = vpack.c.bf16 %v1862, %v1861
    %v1873 = vpack.c.bf16 %v1864, %v1863
    %v1874 = vpack.c.bf16 %v1866, %v1865
    %v1883 = vunpack.c.l.b16 %v1867
    %v1884 = vunpack.c.h.b16 %v1867
    %v1885 = vunpack.c.l.b16 %v1868
    %v1886 = vunpack.c.h.b16 %v1868
    %v1887 = vunpack.c.l.b16 %v1869
    %v1888 = vunpack.c.h.b16 %v1869
    %v1889 = vunpack.c.l.b16 %v1870
    %v1890 = vunpack.c.h.b16 %v1870
    %v1891 = vunpack.c.l.b16 %v1871
    %v1892 = vunpack.c.h.b16 %v1871
    %v1893 = vunpack.c.l.b16 %v1872
    %v1894 = vunpack.c.h.b16 %v1872
    %v1895 = vunpack.c.l.b16 %v1873
    %v1896 = vunpack.c.h.b16 %v1873
    %v1897 = vunpack.c.l.b16 %v1874
    %v1898 = vunpack.c.h.b16 %v1874
    %v1899 = vpack.c.b16 %v1883, %v1883
    %v1900 = vpack.c.b16 %v1884, %v1884
    %v1901 = vpack.c.b16 %v1885, %v1885
    %v1902 = vpack.c.b16 %v1886, %v1886
    %v1903 = vpack.c.b16 %v1887, %v1887
    %v1904 = vpack.c.b16 %v1888, %v1888
    %v1905 = vpack.c.b16 %v1889, %v1889
    %v1906 = vpack.c.b16 %v1890, %v1890
    %v1907 = vpack.c.b16 %v1891, %v1891
    %v1908 = vpack.c.b16 %v1892, %v1892
    %v1909 = vpack.c.b16 %v1893, %v1893
    %v1910 = vpack.c.b16 %v1894, %v1894
    %v1911 = vpack.c.b16 %v1895, %v1895
    %v1912 = vpack.c.b16 %v1896, %v1896
    %v1913 = vpack.c.b16 %v1897, %v1897
    %v1914 = vpack.c.b16 %v1898, %v1898
    %1915 = vrot.lane.b32.xlu0 %v1899, 96
    %v1916 = vpop.permute.xlu0 %1915
    %1917 = vrot.lane.b32.xlu0 %v1900, 96
    %v1918 = vpop.permute.xlu0 %1917
    %1919 = vrot.lane.b32.xlu0 %v1901, 96
    %v1920 = vpop.permute.xlu0 %1919
    %1921 = vrot.lane.b32.xlu0 %v1902, 96
    %v1922 = vpop.permute.xlu0 %1921
    %1923 = vrot.lane.b32.xlu0 %v1903, 96
    %v1924 = vpop.permute.xlu0 %1923
    %1925 = vrot.lane.b32.xlu0 %v1904, 96
    %v1926 = vpop.permute.xlu0 %1925
    %1927 = vrot.lane.b32.xlu0 %v1905, 96
    %v1928 = vpop.permute.xlu0 %1927
    %1929 = vrot.lane.b32.xlu0 %v1906, 96
    %v1930 = vpop.permute.xlu0 %1929
    %1931 = vrot.lane.b32.xlu0 %v1907, 96
    %v1932 = vpop.permute.xlu0 %1931
    %1933 = vrot.lane.b32.xlu0 %v1908, 96
    %v1934 = vpop.permute.xlu0 %1933
    %1935 = vrot.lane.b32.xlu0 %v1909, 96
    %v1936 = vpop.permute.xlu0 %1935
    %1937 = vrot.lane.b32.xlu0 %v1910, 96
    %v1938 = vpop.permute.xlu0 %1937
    %1939 = vrot.lane.b32.xlu0 %v1911, 96
    %v1940 = vpop.permute.xlu0 %1939
    %1941 = vrot.lane.b32.xlu0 %v1912, 96
    %v1942 = vpop.permute.xlu0 %1941
    %1943 = vrot.lane.b32.xlu0 %v1913, 96
    %v1944 = vpop.permute.xlu0 %1943
    %1945 = vrot.lane.b32.xlu0 %v1914, 96
    %v1946 = vpop.permute.xlu0 %1945
    %vm1963 = vcmask 257024
    %1964 = vst.msk [vmem:[#allocation4] sm:$0xf] %vm1963, %v1916
    %1965 = vst.msk [vmem:[#allocation4 + $0x4] sm:$0xf] %vm1963, %v1918
    %1966 = vst.msk [vmem:[#allocation4 + $0x8] sm:$0xf] %vm1963, %v1920
    %1967 = vst.msk [vmem:[#allocation4 + $0xc] sm:$0xf] %vm1963, %v1922
    %1968 = vst.msk [vmem:[#allocation4 + $0x10] sm:$0xf] %vm1963, %v1924
    %1969 = vst.msk [vmem:[#allocation4 + $0x14] sm:$0xf] %vm1963, %v1926
    %1970 = vst.msk [vmem:[#allocation4 + $0x18] sm:$0xf] %vm1963, %v1928
    %1971 = vst.msk [vmem:[#allocation4 + $0x1c] sm:$0xf] %vm1963, %v1930
    %1972 = vst.msk [vmem:[#allocation4 + $0x20] sm:$0xf] %vm1963, %v1932
    %1973 = vst.msk [vmem:[#allocation4 + $0x24] sm:$0xf] %vm1963, %v1934
    %1974 = vst.msk [vmem:[#allocation4 + $0x28] sm:$0xf] %vm1963, %v1936
    %1975 = vst.msk [vmem:[#allocation4 + $0x2c] sm:$0xf] %vm1963, %v1938
    %1976 = vst.msk [vmem:[#allocation4 + $0x30] sm:$0xf] %vm1963, %v1940
    %1977 = vst.msk [vmem:[#allocation4 + $0x34] sm:$0xf] %vm1963, %v1942
    %1978 = vst.msk [vmem:[#allocation4 + $0x38] sm:$0xf] %vm1963, %v1944
    %1979 = vst.msk [vmem:[#allocation4 + $0x3c] sm:$0xf] %vm1963, %v1946
    %v1980 = vmul.f32 %v1295, %v1709
    %v1981 = vmul.f32 %v1296, %v1714
    %v1982 = vmul.f32 %v1297, %v1719
    %v1983 = vmul.f32 %v1298, %v1724
    %v1984 = vmul.f32 %v1299, %v1729
    %v1985 = vmul.f32 %v1300, %v1734
    %v1986 = vmul.f32 %v1301, %v1739
    %v1987 = vmul.f32 %v1302, %v1744
    %v1988 = vmul.f32 %v1303, %v1749
    %v1989 = vmul.f32 %v1304, %v1754
    %v1990 = vmul.f32 %v1305, %v1759
    %v1991 = vmul.f32 %v1306, %v1764
    %v1992 = vmul.f32 %v1307, %v1769
    %v1993 = vmul.f32 %v1308, %v1774
    %v1994 = vmul.f32 %v1309, %v1779
    %v1995 = vmul.f32 %v1310, %v1784
    %v1996 = vpack.c.bf16 %v1981, %v1980
    %v1997 = vpack.c.bf16 %v1983, %v1982
    %v1998 = vpack.c.bf16 %v1985, %v1984
    %v1999 = vpack.c.bf16 %v1987, %v1986
    %v2000 = vpack.c.bf16 %v1989, %v1988
    %v2001 = vpack.c.bf16 %v1991, %v1990
    %v2002 = vpack.c.bf16 %v1993, %v1992
    %v2003 = vpack.c.bf16 %v1995, %v1994
    %v2012 = vunpack.c.l.b16 %v1996
    %v2013 = vunpack.c.h.b16 %v1996
    %v2014 = vunpack.c.l.b16 %v1997
    %v2015 = vunpack.c.h.b16 %v1997
    %v2016 = vunpack.c.l.b16 %v1998
    %v2017 = vunpack.c.h.b16 %v1998
    %v2018 = vunpack.c.l.b16 %v1999
    %v2019 = vunpack.c.h.b16 %v1999
    %v2020 = vunpack.c.l.b16 %v2000
    %v2021 = vunpack.c.h.b16 %v2000
    %v2022 = vunpack.c.l.b16 %v2001
    %v2023 = vunpack.c.h.b16 %v2001
    %v2024 = vunpack.c.l.b16 %v2002
    %v2025 = vunpack.c.h.b16 %v2002
    %v2026 = vunpack.c.l.b16 %v2003
    %v2027 = vunpack.c.h.b16 %v2003
    %v2028 = vpack.c.b16 %v2012, %v2012
    %v2029 = vpack.c.b16 %v2013, %v2013
    %v2030 = vpack.c.b16 %v2014, %v2014
    %v2031 = vpack.c.b16 %v2015, %v2015
    %v2032 = vpack.c.b16 %v2016, %v2016
    %v2033 = vpack.c.b16 %v2017, %v2017
    %v2034 = vpack.c.b16 %v2018, %v2018
    %v2035 = vpack.c.b16 %v2019, %v2019
    %v2036 = vpack.c.b16 %v2020, %v2020
    %v2037 = vpack.c.b16 %v2021, %v2021
    %v2038 = vpack.c.b16 %v2022, %v2022
    %v2039 = vpack.c.b16 %v2023, %v2023
    %v2040 = vpack.c.b16 %v2024, %v2024
    %v2041 = vpack.c.b16 %v2025, %v2025
    %v2042 = vpack.c.b16 %v2026, %v2026
    %v2043 = vpack.c.b16 %v2027, %v2027
    %2044 = vrot.lane.b32.xlu0 %v2028, 32
    %v2045 = vpop.permute.xlu0 %2044
    %2046 = vrot.lane.b32.xlu0 %v2029, 32
    %v2047 = vpop.permute.xlu0 %2046
    %2048 = vrot.lane.b32.xlu0 %v2030, 32
    %v2049 = vpop.permute.xlu0 %2048
    %2050 = vrot.lane.b32.xlu0 %v2031, 32
    %v2051 = vpop.permute.xlu0 %2050
    %2052 = vrot.lane.b32.xlu0 %v2032, 32
    %v2053 = vpop.permute.xlu0 %2052
    %2054 = vrot.lane.b32.xlu0 %v2033, 32
    %v2055 = vpop.permute.xlu0 %2054
    %2056 = vrot.lane.b32.xlu0 %v2034, 32
    %v2057 = vpop.permute.xlu0 %2056
    %2058 = vrot.lane.b32.xlu0 %v2035, 32
    %v2059 = vpop.permute.xlu0 %2058
    %2060 = vrot.lane.b32.xlu0 %v2036, 32
    %v2061 = vpop.permute.xlu0 %2060
    %2062 = vrot.lane.b32.xlu0 %v2037, 32
    %v2063 = vpop.permute.xlu0 %2062
    %2064 = vrot.lane.b32.xlu0 %v2038, 32
    %v2065 = vpop.permute.xlu0 %2064
    %2066 = vrot.lane.b32.xlu0 %v2039, 32
    %v2067 = vpop.permute.xlu0 %2066
    %2068 = vrot.lane.b32.xlu0 %v2040, 32
    %v2069 = vpop.permute.xlu0 %2068
    %2070 = vrot.lane.b32.xlu0 %v2041, 32
    %v2071 = vpop.permute.xlu0 %2070
    %2072 = vrot.lane.b32.xlu0 %v2042, 32
    %v2073 = vpop.permute.xlu0 %2072
    %2074 = vrot.lane.b32.xlu0 %v2043, 32
    %v2075 = vpop.permute.xlu0 %2074
    %vm2092 = vcmask 519424
    %2093 = vst.msk [vmem:[#allocation4] sm:$0xf] %vm2092, %v2045
    %2094 = vst.msk [vmem:[#allocation4 + $0x4] sm:$0xf] %vm2092, %v2047
    %2095 = vst.msk [vmem:[#allocation4 + $0x8] sm:$0xf] %vm2092, %v2049
    %2096 = vst.msk [vmem:[#allocation4 + $0xc] sm:$0xf] %vm2092, %v2051
    %2097 = vst.msk [vmem:[#allocation4 + $0x10] sm:$0xf] %vm2092, %v2053
    %2098 = vst.msk [vmem:[#allocation4 + $0x14] sm:$0xf] %vm2092, %v2055
    %2099 = vst.msk [vmem:[#allocation4 + $0x18] sm:$0xf] %vm2092, %v2057
    %2100 = vst.msk [vmem:[#allocation4 + $0x1c] sm:$0xf] %vm2092, %v2059
    %2101 = vst.msk [vmem:[#allocation4 + $0x20] sm:$0xf] %vm2092, %v2061
    %2102 = vst.msk [vmem:[#allocation4 + $0x24] sm:$0xf] %vm2092, %v2063
    %2103 = vst.msk [vmem:[#allocation4 + $0x28] sm:$0xf] %vm2092, %v2065
    %2104 = vst.msk [vmem:[#allocation4 + $0x2c] sm:$0xf] %vm2092, %v2067
    %2105 = vst.msk [vmem:[#allocation4 + $0x30] sm:$0xf] %vm2092, %v2069
    %2106 = vst.msk [vmem:[#allocation4 + $0x34] sm:$0xf] %vm2092, %v2071
    %2107 = vst.msk [vmem:[#allocation4 + $0x38] sm:$0xf] %vm2092, %v2073
    %2108 = vst.msk [vmem:[#allocation4 + $0x3c] sm:$0xf] %vm2092, %v2075
    %v2109 = vpack.c.bf16 %v1714, %v1709
    %v2110 = vpack.c.bf16 %v1724, %v1719
    %v2111 = vpack.c.bf16 %v1734, %v1729
    %v2112 = vpack.c.bf16 %v1744, %v1739
    %v2113 = vpack.c.bf16 %v1754, %v1749
    %v2114 = vpack.c.bf16 %v1764, %v1759
    %v2115 = vpack.c.bf16 %v1774, %v1769
    %v2116 = vpack.c.bf16 %v1784, %v1779
    %v2125 = vunpack.c.l.b16 %v2109
    %v2126 = vunpack.c.h.b16 %v2109
    %v2127 = vunpack.c.l.b16 %v2110
    %v2128 = vunpack.c.h.b16 %v2110
    %v2129 = vunpack.c.l.b16 %v2111
    %v2130 = vunpack.c.h.b16 %v2111
    %v2131 = vunpack.c.l.b16 %v2112
    %v2132 = vunpack.c.h.b16 %v2112
    %v2133 = vunpack.c.l.b16 %v2113
    %v2134 = vunpack.c.h.b16 %v2113
    %v2135 = vunpack.c.l.b16 %v2114
    %v2136 = vunpack.c.h.b16 %v2114
    %v2137 = vunpack.c.l.b16 %v2115
    %v2138 = vunpack.c.h.b16 %v2115
    %v2139 = vunpack.c.l.b16 %v2116
    %v2140 = vunpack.c.h.b16 %v2116
    %v2141 = vpack.c.b16 %v2125, %v2125
    %v2142 = vpack.c.b16 %v2126, %v2126
    %v2143 = vpack.c.b16 %v2127, %v2127
    %v2144 = vpack.c.b16 %v2128, %v2128
    %v2145 = vpack.c.b16 %v2129, %v2129
    %v2146 = vpack.c.b16 %v2130, %v2130
    %v2147 = vpack.c.b16 %v2131, %v2131
    %v2148 = vpack.c.b16 %v2132, %v2132
    %v2149 = vpack.c.b16 %v2133, %v2133
    %v2150 = vpack.c.b16 %v2134, %v2134
    %v2151 = vpack.c.b16 %v2135, %v2135
    %v2152 = vpack.c.b16 %v2136, %v2136
    %v2153 = vpack.c.b16 %v2137, %v2137
    %v2154 = vpack.c.b16 %v2138, %v2138
    %v2155 = vpack.c.b16 %v2139, %v2139
    %v2156 = vpack.c.b16 %v2140, %v2140
    %2157 = vrot.lane.b32.xlu0 %v2141, 64
    %v2158 = vpop.permute.xlu0 %2157
    %2159 = vrot.lane.b32.xlu0 %v2142, 64
    %v2160 = vpop.permute.xlu0 %2159
    %2161 = vrot.lane.b32.xlu0 %v2143, 64
    %v2162 = vpop.permute.xlu0 %2161
    %2163 = vrot.lane.b32.xlu0 %v2144, 64
    %v2164 = vpop.permute.xlu0 %2163
    %2165 = vrot.lane.b32.xlu0 %v2145, 64
    %v2166 = vpop.permute.xlu0 %2165
    %2167 = vrot.lane.b32.xlu0 %v2146, 64
    %v2168 = vpop.permute.xlu0 %2167
    %2169 = vrot.lane.b32.xlu0 %v2147, 64
    %v2170 = vpop.permute.xlu0 %2169
    %2171 = vrot.lane.b32.xlu0 %v2148, 64
    %v2172 = vpop.permute.xlu0 %2171
    %2173 = vrot.lane.b32.xlu0 %v2149, 64
    %v2174 = vpop.permute.xlu0 %2173
    %2175 = vrot.lane.b32.xlu0 %v2150, 64
    %v2176 = vpop.permute.xlu0 %2175
    %2177 = vrot.lane.b32.xlu0 %v2151, 64
    %v2178 = vpop.permute.xlu0 %2177
    %2179 = vrot.lane.b32.xlu0 %v2152, 64
    %v2180 = vpop.permute.xlu0 %2179
    %2181 = vrot.lane.b32.xlu0 %v2153, 64
    %v2182 = vpop.permute.xlu0 %2181
    %2183 = vrot.lane.b32.xlu0 %v2154, 64
    %v2184 = vpop.permute.xlu0 %2183
    %2185 = vrot.lane.b32.xlu0 %v2155, 64
    %v2186 = vpop.permute.xlu0 %2185
    %2187 = vrot.lane.b32.xlu0 %v2156, 64
    %v2188 = vpop.permute.xlu0 %2187
    %vm2205 = vcmask 781824
    %2206 = vst.msk [vmem:[#allocation4] sm:$0xf] %vm2205, %v2158
    %2207 = vst.msk [vmem:[#allocation4 + $0x4] sm:$0xf] %vm2205, %v2160
    %2208 = vst.msk [vmem:[#allocation4 + $0x8] sm:$0xf] %vm2205, %v2162
    %2209 = vst.msk [vmem:[#allocation4 + $0xc] sm:$0xf] %vm2205, %v2164
    %2210 = vst.msk [vmem:[#allocation4 + $0x10] sm:$0xf] %vm2205, %v2166
    %2211 = vst.msk [vmem:[#allocation4 + $0x14] sm:$0xf] %vm2205, %v2168
    %2212 = vst.msk [vmem:[#allocation4 + $0x18] sm:$0xf] %vm2205, %v2170
    %2213 = vst.msk [vmem:[#allocation4 + $0x1c] sm:$0xf] %vm2205, %v2172
    %2214 = vst.msk [vmem:[#allocation4 + $0x20] sm:$0xf] %vm2205, %v2174
    %2215 = vst.msk [vmem:[#allocation4 + $0x24] sm:$0xf] %vm2205, %v2176
    %2216 = vst.msk [vmem:[#allocation4 + $0x28] sm:$0xf] %vm2205, %v2178
    %2217 = vst.msk [vmem:[#allocation4 + $0x2c] sm:$0xf] %vm2205, %v2180
    %2218 = vst.msk [vmem:[#allocation4 + $0x30] sm:$0xf] %vm2205, %v2182
    %2219 = vst.msk [vmem:[#allocation4 + $0x34] sm:$0xf] %vm2205, %v2184
    %2220 = vst.msk [vmem:[#allocation4 + $0x38] sm:$0xf] %vm2205, %v2186
    %2221 = vst.msk [vmem:[#allocation4 + $0x3c] sm:$0xf] %vm2205, %v2188
    %v2222 = vld [vmem:[#allocation5] sm:$0xff]
    %v2223 = vld [vmem:[#allocation4] sm:$0xf]
    %v2224 = vld [vmem:[#allocation4 + $0x4] sm:$0xf]
    %v2225 = vld [vmem:[#allocation4 + $0x8] sm:$0xf]
    %v2226 = vld [vmem:[#allocation4 + $0xc] sm:$0xf]
    %v2227 = vld [vmem:[#allocation4 + $0x10] sm:$0xf]
    %v2228 = vld [vmem:[#allocation4 + $0x14] sm:$0xf]
    %v2229 = vld [vmem:[#allocation4 + $0x18] sm:$0xf]
    %v2230 = vld [vmem:[#allocation4 + $0x1c] sm:$0xf]
    %v2231 = vld [vmem:[#allocation4 + $0x20] sm:$0xf]
    %v2232 = vld [vmem:[#allocation4 + $0x24] sm:$0xf]
    %v2233 = vld [vmem:[#allocation4 + $0x28] sm:$0xf]
    %v2234 = vld [vmem:[#allocation4 + $0x2c] sm:$0xf]
    %v2235 = vld [vmem:[#allocation4 + $0x30] sm:$0xf]
    %v2236 = vld [vmem:[#allocation4 + $0x34] sm:$0xf]
    %v2237 = vld [vmem:[#allocation4 + $0x38] sm:$0xf]
    %v2238 = vld [vmem:[#allocation4 + $0x3c] sm:$0xf]
    %v2255 = vunpack.c.l.b16 %v2223
    %v2256 = vunpack.c.l.b16 %v2224
    %v2257 = vunpack.c.l.b16 %v2225
    %v2258 = vunpack.c.l.b16 %v2226
    %v2259 = vunpack.c.l.b16 %v2227
    %v2260 = vunpack.c.l.b16 %v2228
    %v2261 = vunpack.c.l.b16 %v2229
    %v2262 = vunpack.c.l.b16 %v2230
    %v2263 = vunpack.c.l.b16 %v2231
    %v2264 = vunpack.c.l.b16 %v2232
    %v2265 = vunpack.c.l.b16 %v2233
    %v2266 = vunpack.c.l.b16 %v2234
    %v2267 = vunpack.c.l.b16 %v2235
    %v2268 = vunpack.c.l.b16 %v2236
    %v2269 = vunpack.c.l.b16 %v2237
    %v2270 = vunpack.c.l.b16 %v2238
    %v2271 = vpack.c.b16 %v2256, %v2255
    %v2272 = vpack.c.b16 %v2258, %v2257
    %v2273 = vpack.c.b16 %v2260, %v2259
    %v2274 = vpack.c.b16 %v2262, %v2261
    %v2275 = vpack.c.b16 %v2264, %v2263
    %v2276 = vpack.c.b16 %v2266, %v2265
    %v2277 = vpack.c.b16 %v2268, %v2267
    %v2278 = vpack.c.b16 %v2270, %v2269
    %2287 = vmatprep.subr.bf16.mxu0 0
    %2288 = vmatpush1.bf16.msra.mxu0 %v2278
    %2289 = vmatprep.subr.bf16.mxu0 0
    %2290 = vmatpush1.bf16.msra.mxu0 %v2277
    %2291 = vmatprep.subr.bf16.mxu0 0
    %2292 = vmatpush1.bf16.msra.mxu0 %v2276
    %2293 = vmatprep.subr.bf16.mxu0 0
    %2294 = vmatpush1.bf16.msra.mxu0 %v2275
    %2295 = vmatprep.subr.bf16.mxu0 0
    %2296 = vmatpush1.bf16.msra.mxu0 %v2274
    %2297 = vmatprep.subr.bf16.mxu0 0
    %2298 = vmatpush1.bf16.msra.mxu0 %v2273
    %2299 = vmatprep.subr.bf16.mxu0 0
    %2300 = vmatpush1.bf16.msra.mxu0 %v2272
    %2301 = vmatprep.subr.bf16.mxu0 0
    %2302 = vmatpush1.bf16.msra.mxu0 %v2271
    %2303 = vmatprep.subr.bf16.mxu0 0
    %2304 = vmatpush2.bf16.msra.mxu0 0
    %2305 = vmatprep.subr.bf16.mxu0 0
    %2306 = vmatpush2.bf16.msra.mxu0 0
    %2307 = vmatprep.subr.bf16.mxu0 0
    %2308 = vmatpush2.bf16.msra.mxu0 0
    %2309 = vmatprep.subr.bf16.mxu0 0
    %2310 = vmatpush2.bf16.msra.mxu0 0
    %2311 = vmatprep.subr.bf16.mxu0 0
    %2312 = vmatpush2.bf16.msra.mxu0 0
    %2313 = vmatprep.subr.bf16.mxu0 0
    %2314 = vmatpush2.bf16.msra.mxu0 0
    %2315 = vmatprep.subr.bf16.mxu0 0
    %2316 = vmatpush2.bf16.msra.mxu0 0
    %2317 = vmatprep.subr.bf16.mxu0 0
    %2318 = vmatpush2.bf16.msra.mxu0 0
    %2319 = vmatprep.mubr.bf16.mxu0 0
    %2320 = vmatmul.mubr.bf16.gmra.mxu0 %v457
    %v2321 = vpop.f32.mrf.mxu0
    %v2322 = vadd.f32 0.0, %v2321
    %v2323 = vpop.f32.mrf.mxu0
    %v2324 = vpop.f32.mrf.mxu0
    %v2325 = vpop.f32.mrf.mxu0
    %2326 = vdwg.mxu0
    %v2327 = vadd.f32 %v2222, %v2322
    %vm2328 = vcmask 785408
    %2329 = vst.msk [vmem:[#allocation5] sm:$0xff] %vm2328, %v2327
    // Predicated region
    $region70: #{tpu_custom_call.1} parent=1 // pred_check
      %p2330 = pneg %p57
    $region71: #{tpu_custom_call.1} parent=1 // pred_check_branch
      %2332 = sbr.rel (%p2330) target = $region73
    $region72: #{tpu_custom_call.1} parent=1 // pred_region
      %v2333 = vld [vmem:[#allocation5] sm:$0xff]
      %v2334 = vadd.f32 %v2333, 1e-16
      %v2335 = vrcp.pop %v2334
      %v2336 = vmul.f32 1.0, %v2335
      %2338 = vrot.lane.b32.xlu0 %v2336, 64
      %v2339 = vpop.permute.xlu0 %2338
      %v2341 = vmul.f32 %v2333, %v2339
      %2342 = vrot.lane.b32.xlu0 %v2336, 96
      %v2343 = vpop.permute.xlu0 %2342
      %v2345 = vmul.f32 %v2333, %v2343
      %v2346 = vld [vmem:[%s15] sm:$0xff]
      %v2347 = vld [vmem:[%s15 + $0x8] sm:$0xff]
      %v2348 = vld [vmem:[%s15 + $0x10] sm:$0xff]
      %v2349 = vld [vmem:[%s15 + $0x18] sm:$0xff]
      %2351 = vrot.lane.b32.xlu0 %v2345, 96
      %v2352 = vpop.permute.xlu0 %2351
      %v2353 = vsel %vm789, %v2352, 0
      %2355 = vmatprep.subr.mxu0 0.0
      %2356 = vmatpush1.msra.mxu0 0.0
      %2357 = vmatprep.subr.mxu0 0.0
      %2358 = vmatpush1.msra.mxu0 0.0
      %2359 = vmatprep.subr.mxu0 0.0
      %2360 = vmatpush1.msra.mxu0 0.0
      %2361 = vmatprep.subr.mxu0 0.0
      %2362 = vmatpush1.msra.mxu0 0.0
      %2363 = vmatprep.subr.mxu0 0.0
      %2364 = vmatpush1.msra.mxu0 0.0
      %2365 = vmatprep.subr.mxu0 0.0
      %2366 = vmatpush1.msra.mxu0 0.0
      %2367 = vmatprep.subr.mxu0 0.0
      %2368 = vmatpush1.msra.mxu0 0.0
      %2369 = vmatprep.subr.mxu0 0.0
      %2370 = vmatpush1.msra.mxu0 0.0
      %2371 = vmatprep.subr.mxu0 0.0
      %2372 = vmatpush1.msra.mxu0 0.0
      %2373 = vmatprep.subr.mxu0 0.0
      %2374 = vmatpush1.msra.mxu0 0.0
      %2375 = vmatprep.subr.mxu0 0.0
      %2376 = vmatpush1.msra.mxu0 0.0
      %2377 = vmatprep.subr.mxu0 0.0
      %2378 = vmatpush1.msra.mxu0 0.0
      %2379 = vmatprep.subr.mxu0 0.0
      %2380 = vmatpush1.msra.mxu0 %v2349
      %2381 = vmatprep.subr.mxu0 0.0
      %2382 = vmatpush1.msra.mxu0 %v2348
      %2383 = vmatprep.subr.mxu0 0.0
      %2384 = vmatpush1.msra.mxu0 %v2347
      %2385 = vmatprep.subr.mxu0 0.0
      %2386 = vmatpush1.msra.mxu0 %v2346
      %2387 = vmatprep.subr.mxu0 0.0
      %2388 = vmatpush2.msra.mxu0 0.0
      %2389 = vmatprep.subr.mxu0 0.0
      %2390 = vmatpush2.msra.mxu0 0.0
      %2391 = vmatprep.subr.mxu0 0.0
      %2392 = vmatpush2.msra.mxu0 0.0
      %2393 = vmatprep.subr.mxu0 0.0
      %2394 = vmatpush2.msra.mxu0 0.0
      %2395 = vmatprep.subr.mxu0 0.0
      %2396 = vmatpush2.msra.mxu0 0.0
      %2397 = vmatprep.subr.mxu0 0.0
      %2398 = vmatpush2.msra.mxu0 0.0
      %2399 = vmatprep.subr.mxu0 0.0
      %2400 = vmatpush2.msra.mxu0 0.0
      %2401 = vmatprep.subr.mxu0 0.0
      %2402 = vmatpush2.msra.mxu0 0.0
      %2403 = vmatprep.subr.mxu0 0.0
      %2404 = vmatpush2.msra.mxu0 0.0
      %2405 = vmatprep.subr.mxu0 0.0
      %2406 = vmatpush2.msra.mxu0 0.0
      %2407 = vmatprep.subr.mxu0 0.0
      %2408 = vmatpush2.msra.mxu0 0.0
      %2409 = vmatprep.subr.mxu0 0.0
      %2410 = vmatpush2.msra.mxu0 0.0
      %2411 = vmatprep.subr.mxu0 0.0
      %2412 = vmatpush2.msra.mxu0 0.0
      %2413 = vmatprep.subr.mxu0 0.0
      %2414 = vmatpush2.msra.mxu0 0.0
      %2415 = vmatprep.subr.mxu0 0.0
      %2416 = vmatpush2.msra.mxu0 0.0
      %2417 = vmatprep.subr.mxu0 0.0
      %2418 = vmatpush2.msra.mxu0 0.0
      %2419 = vmatprep.mubr.f32.mxu0 0.0
      %2420 = vmatmul.mubr.f32.gmra.mxu0 %v2353
      %v2421 = vpop.f32.mrf.mxu0
      %v2422 = vadd.f32 0.0, %v2421
      %v2423 = vpop.f32.mrf.mxu0
      %2424 = vdwg.mxu0
      %v2425 = vadd.f32 %v2341, %v2422
      %2426 = vst.msk [vmem:[#allocation6] sm:$0xff] %vm789, %v2425
    $region73: #{tpu_custom_call.1} parent=1 // pred_fallthru
      _
    // Predicated region
    $region74: #{tpu_custom_call.1} parent=1 // pred_check
      _
    $region75: #{tpu_custom_call.1} parent=1 // pred_check_branch
      %2428 = sbr.rel (0) target = $region77
    $region76: #{tpu_custom_call.1} parent=1 // pred_region
      %s2430 = ssub.s32 128, 128
      %2431 = vsyncadd [#allocation7], %s2430
      %s2433 = sshll.u32 [#allocation6], 4
      %s2434 = int_to_ptr.vmem [resolvable:$true] %s2433
      %2436 = dma.vmem_to_hbm [thread:$0]  %s2434, 128, %s16, [#allocation7]
    $region77: #{tpu_custom_call.1} parent=1 // pred_fallthru
      _
    // Predicated region
    $region78: #{tpu_custom_call.1} parent=1 // pred_check
      _
    $region79: #{tpu_custom_call.1} parent=1 // pred_check_branch
      %2438 = sbr.rel (0) target = $region81
    $region80: #{tpu_custom_call.1} parent=1 // pred_region
      _
    $region81: #{tpu_custom_call.1} parent=1 // pred_fallthru
      _
    // Predicated region
    $region82: #{tpu_custom_call.1} parent=1 // pred_check
      _
    $region83: #{tpu_custom_call.1} parent=1 // pred_check_branch
      %2440 = sbr.rel (0) target = $region85
    $region84: #{tpu_custom_call.1} parent=1 // pred_region
      %2441 = dma.done [#allocation7], 128
    $region85: #{tpu_custom_call.1} parent=1 // pred_fallthru
      _
    // Predicated region
    $region86: #{tpu_custom_call.1} parent=1 // pred_check
      _
    $region87: #{tpu_custom_call.1} parent=1 // pred_check_branch
      %2443 = sbr.rel (0) target = $region89
    $region88: #{tpu_custom_call.1} parent=1 // pred_region
      _
    $region89: #{tpu_custom_call.1} parent=1 // pred_fallthru
      _
    %2444 = vsyncpa [#allocation7], 1

</llo_original>
